<compile_context>
chip_gen: v6e
topology: v6e:2x2x1
jax: 0.10.0
libtpu: 0.0.40
codegen_flags: <defaults>
</compile_context>

<pallas_src>
import math

import jax
import jax.numpy as jnp
from jax import lax
from jax.experimental import pallas as pl
from jax.experimental.pallas import tpu as pltpu


# Conv hyper-parameters fixed by the PyTorch module.
C1_IN, C1_OUT = 1, 16
K1H, K1W, S1H, S1W, P1H, P1W = 7, 20, 1, 5, 3, 10
C2_OUT = 8
K2H, K2W, S2H, S2W, P2H, P2W = 20, 4, 5, 1, 1, 2

LANES = 128
TPG = LANES // C1_OUT          # taps per 128-lane group = 8
BH2 = 16                       # conv2 output rows (ho2) per grid step (mult of 8)


def _round_up(v, m):
    return (v + m - 1) // m * m


def fused_conv_forward(x, w1, b1, w2, b2):
    """x: (N, 1, H, W) float32 NCHW.  Returns (N, 8, Hout2, Wout2) float32."""
    N, C, H, W = x.shape
    assert C == C1_IN
    Hout1 = (H + 2 * P1H - K1H) // S1H + 1
    Wout1 = (W + 2 * P1W - K1W) // S1W + 1
    Hout2 = (Hout1 + 2 * P2H - K2H) // S2H + 1
    Wout2 = (Wout1 + 2 * P2W - K2W) // S2W + 1
    # The conv2 W-tap packing below relies on every (wo1, wo2) pair mapping to
    # a valid kj, which holds for the module's W=8 (Wout1=2, Wout2=3).
    assert Wout1 == 2 and Wout2 == 3 and Hout2 >= 1

    K1 = C1_IN * K1H * K1W                      # 140 conv1 patch features
    NTAP = K2H * Wout1                          # 40 conv2 taps (ki, wo1)
    assert NTAP % TPG == 0
    NG = NTAP // TPG                            # 5 lane groups of 8 taps
    SEG = _round_up(K1 + 1, 8)                  # 144 per-tap segment (+ bias col)
    KB = TPG * SEG                              # 1152 conv1 contraction dim
    O2 = C2_OUT * Wout2                         # 24 output columns
    nblk = (Hout2 + BH2 - 1) // BH2
    Mtot = nblk * BH2
    dtype = jnp.float32

    # ----------------------------- host-side prep ----------------------------
    # conv1 im2col in one op: (N, K1, Hout1, Wout1); feature order (c, ki, kj)
    # matches w1.reshape(C1_OUT, K1).
    patches = lax.conv_general_dilated_patches(
        x, (K1H, K1W), (S1H, S1W),
        padding=((P1H, P1H), (P1W, P1W)),
        dimension_numbers=("NCHW", "OIHW", "NCHW"))
    pt = patches.transpose(0, 2, 3, 1)                      # (N, Hout1, Wout1, K1)

    # conv2 tap (ki, wo1) of output row ho2 reads conv1 row h1 = S2H*ho2+ki-P2H.
    ho2 = jnp.arange(Mtot)
    ki = jnp.arange(K2H)
    h1 = S2H * ho2[:, None] + ki[None, :] - P2H             # (Mtot, K2H)
    valid = (h1 >= 0) & (h1 < Hout1) & (ho2[:, None] < Hout2)
    validf = valid.astype(dtype)
    h1c = jnp.clip(h1, 0, Hout1 - 1)
    g = pt[:, h1c, :, :]                                    # (N, Mtot, K2H, Wout1, K1)
    g = g * validf[None, :, :, None, None]
    # Valid-row indicator doubles as the conv1 bias input (bias folded into the
    # weights), so out-of-range rows come out of the ReLU as exact zeros.
    vcol = jnp.broadcast_to(validf[None, :, :, None, None],
                            (N, Mtot, K2H, Wout1, 1))
    feat = jnp.concatenate([g, vcol], axis=-1)              # (..., K1+1)
    feat = jnp.pad(feat, ((0, 0),) * 4 + ((0, SEG - (K1 + 1)),))
    # Rows ordered (n, block, group j, ho2-in-block); cols = (tap-in-group, k).
    f = feat.reshape(N, Mtot, NTAP, SEG).transpose(0, 2, 1, 3)   # (N,NTAP,Mtot,SEG)
    f = f.reshape(N, NG, TPG, nblk, BH2, SEG).transpose(0, 3, 1, 4, 2, 5)
    p1 = f.reshape(N, nblk, NG * BH2, KB)

    # conv1 weights as a block-diagonal (KB, 128) matrix: tap-in-group u uses
    # rows [u*SEG, u*SEG+K1+1) and columns [u*16, (u+1)*16); bias in row K1.
    w1aug = jnp.concatenate([w1.reshape(C1_OUT, K1).astype(dtype),
                             b1[:, None].astype(dtype)], axis=1)
    w1aug = jnp.pad(w1aug, ((0, 0), (0, SEG - (K1 + 1))))        # (16, SEG)
    w1bd = jnp.kron(jnp.eye(TPG, dtype=dtype), w1aug.T)          # (KB, 128)

    # conv2 weights packed as (NTAP*16, 24): kj = wo1 + P2W - wo2.
    kj = jnp.arange(Wout1)[:, None] + P2W - jnp.arange(Wout2)[None, :]   # (2,3)
    w2sel = w2[:, :, :, kj]                                      # (8,16,20,2,3)
    w2p = w2sel.transpose(2, 3, 1, 0, 4).reshape(NTAP * C1_OUT, O2)       # (640,24)
    b2row = jnp.repeat(b2, Wout2)[None, :].astype(dtype)         # (1, 24)

    # -------------------------------- kernel ---------------------------------
    def kernel(p1_ref, w1_ref, w2_ref, b2_ref, o_ref, scr_ref):
        # conv1: one block-diagonal MXU matmul covering all 40 taps
        # (5 lane-groups x 8 taps x 16 channels), bias folded in, ReLU fused.
        a1 = jnp.maximum(
            jnp.dot(p1_ref[...], w1_ref[...],
                    preferred_element_type=jnp.float32), 0.0)    # (NG*BH2, 128)
        # Drop each tap group into its 128-lane column block of the conv2
        # im2col scratch: 5 fully aligned (BH2, 128) copies (unmasked stores).
        for j in range(NG):
            scr_ref[:, j * LANES:(j + 1) * LANES] = a1[j * BH2:(j + 1) * BH2, :]
        # conv2: one (BH2, 640) x (640, 24) matmul; bias + ReLU fused; single
        # full-block store.
        o_ref[...] = jnp.maximum(
            jnp.dot(scr_ref[...], w2_ref[...],
                    preferred_element_type=jnp.float32) + b2_ref[...], 0.0)

    flops = N * nblk * (2 * NG * BH2 * KB * LANES + 2 * BH2 * NG * LANES * O2)
    bytes_accessed = 4 * (p1.size + w1bd.size + w2p.size + b2row.size
                          + N * nblk * BH2 * O2)

    out_raw = pl.pallas_call(
        kernel,
        out_shape=jax.ShapeDtypeStruct((N, nblk, BH2, O2), jnp.float32),
        grid=(N, nblk),
        in_specs=[
            pl.BlockSpec((None, None, NG * BH2, KB), lambda n, b: (n, b, 0, 0)),
            pl.BlockSpec((KB, LANES), lambda n, b: (0, 0)),
            pl.BlockSpec((NTAP * C1_OUT, O2), lambda n, b: (0, 0)),
            pl.BlockSpec((1, O2), lambda n, b: (0, 0)),
        ],
        out_specs=pl.BlockSpec((None, None, BH2, O2), lambda n, b: (n, b, 0, 0)),
        scratch_shapes=[pltpu.VMEM((BH2, NG * LANES), jnp.float32)],
        compiler_params=pltpu.CompilerParams(
            dimension_semantics=("parallel", "parallel")),
        cost_estimate=pl.CostEstimate(flops=flops, transcendentals=0,
                                      bytes_accessed=bytes_accessed),
    )(p1, w1bd, w2p, b2row)

    # (n, block, ho2-in-block, c2*wo2) -> NCHW, dropping the ho2 padding rows.
    out = out_raw.reshape(N, Mtot, O2)[:, :Hout2, :]
    return out.reshape(N, Hout2, C2_OUT, Wout2).transpose(0, 2, 1, 3)


# ----------------------------------- model -----------------------------------

def _conv_params(key, out_ch, in_ch, kh, kw):
    # PyTorch-style uniform(-1/sqrt(fan_in), 1/sqrt(fan_in)) init, deterministic.
    fan_in = in_ch * kh * kw
    bound = 1.0 / math.sqrt(fan_in)
    kw_key, kb_key = jax.random.split(key)
    w = jax.random.uniform(kw_key, (out_ch, in_ch, kh, kw), jnp.float32,
                           minval=-bound, maxval=bound)
    b = jax.random.uniform(kb_key, (out_ch,), jnp.float32,
                           minval=-bound, maxval=bound)
    return w, b


def init_params(key):
    k1, k2 = jax.random.split(key)
    w1, b1 = _conv_params(k1, C1_OUT, C1_IN, K1H, K1W)
    w2, b2 = _conv_params(k2, C2_OUT, C1_OUT, K2H, K2W)
    return (w1, b1), (w2, b2)


@jax.jit
def model_forward(x, params):
    (w1, b1), (w2, b2) = params
    return fused_conv_forward(x, w1, b1, w2, b2)


# ------------------------------------ main ------------------------------------

if __name__ == "__main__":
    key = jax.random.PRNGKey(0)
    kx, kp = jax.random.split(key)

    # Small input consistent with the module (NCHW, 1 input channel, W=8).
    x = jax.random.normal(kx, (2, 1, 64, 8), jnp.float32)
    params = init_params(kp)

    out = jax.block_until_ready(model_forward(x, params))

    # Reference check against XLA's native convolutions (full f32 precision).
    (w1, b1), (w2, b2) = params

    def ref_conv(v, w, b, stride, padding):
        y = lax.conv_general_dilated(
            v, w, window_strides=stride,
            padding=[(padding[0], padding[0]), (padding[1], padding[1])],
            dimension_numbers=("NCHW", "OIHW", "NCHW"),
            precision=lax.Precision.HIGHEST)
        return jnp.maximum(y + b[None, :, None, None], 0.0)

    ref = ref_conv(ref_conv(x, w1, b1, (S1H, S1W), (P1H, P1W)),
                   w2, b2, (S2H, S2W), (P2H, P2W))
    assert out.shape == ref.shape, (out.shape, ref.shape)
    assert jnp.max(jnp.abs(out - ref)) < 2e-4

    print("KERNEL_OK")
</pallas_src>

<mosaic_0001>
module attributes {stable_mosaic.version = 11 : i64} {
  func.func @kernel(%arg0: i32, %arg1: i32, %arg2: memref<1x1x80x1152xf32, #tpu.memory_space<vmem>>, %arg3: memref<1152x128xf32, #tpu.memory_space<vmem>>, %arg4: memref<640x24xf32, #tpu.memory_space<vmem>>, %arg5: memref<1x24xf32, #tpu.memory_space<vmem>>, %arg6: memref<1x1x16x24xf32, #tpu.memory_space<vmem>>, %arg7: memref<16x640xf32, #tpu.memory_space<vmem>>) attributes {dimension_semantics = [#tpu.dimension_semantics<parallel>, #tpu.dimension_semantics<parallel>], iteration_bounds = array<i64: 2, 1>, scalar_prefetch = 0 : i64, scratch_operands = 1 : i64, tpu.core_type = #tpu.core_type<tc>, window_params = [{transform_indices = @transform_0, window_bounds = array<i64: 1, 1, 80, 1152>}, {pipeline_mode = #tpu.pipeline_mode<synchronous>, transform_indices = @transform_1, window_bounds = array<i64: 1152, 128>}, {pipeline_mode = #tpu.pipeline_mode<synchronous>, transform_indices = @transform_2, window_bounds = array<i64: 640, 24>}, {pipeline_mode = #tpu.pipeline_mode<synchronous>, transform_indices = @transform_3, window_bounds = array<i64: 1, 24>}, {transform_indices = @transform_4, window_bounds = array<i64: 1, 1, 16, 24>}]} {
    %c0 = arith.constant 0 : index
    %c0_0 = arith.constant 0 : index
    %c0_1 = arith.constant 0 : index
    %c0_2 = arith.constant 0 : index
    %0 = vector.load %arg2[%c0, %c0_0, %c0_1, %c0_2] : memref<1x1x80x1152xf32, #tpu.memory_space<vmem>>, vector<1x1x80x1152xf32>
    %1 = vector.shape_cast %0 : vector<1x1x80x1152xf32> to vector<80x1152xf32>
    %c0_3 = arith.constant 0 : index
    %c0_4 = arith.constant 0 : index
    %2 = vector.load %arg3[%c0_3, %c0_4] : memref<1152x128xf32, #tpu.memory_space<vmem>>, vector<1152x128xf32>
    %cst = arith.constant dense<0.000000e+00> : vector<80x128xf32>
    %3 = tpu.matmul %1, %2, %cst {dimension_numbers = #tpu.dot_dimension_numbers<[1], [0], [0], [1], [0, 0, 1, 1], [], []>} : vector<80x1152xf32>, vector<1152x128xf32>, vector<80x128xf32> -> vector<80x128xf32>
    %cst_5 = arith.constant 0.000000e+00 : f32
    %4 = vector.broadcast %cst_5 : f32 to vector<80x128xf32>
    %5 = arith.maximumf %3, %4 : vector<80x128xf32>
    %6 = vector.extract_strided_slice %5 {offsets = [0, 0], sizes = [16, 128], strides = [1, 1]} : vector<80x128xf32> to vector<16x128xf32>
    %c0_6 = arith.constant 0 : index
    %c0_7 = arith.constant 0 : index
    %7 = vector.load %arg7[%c0_6, %c0_7] : memref<16x640xf32, #tpu.memory_space<vmem>>, vector<16x128xf32>
    tpu.vector_store %arg7[%c0_6, %c0_7], %6 {strides = array<i32>} : memref<16x640xf32, #tpu.memory_space<vmem>>, vector<16x128xf32>,
    %8 = vector.extract_strided_slice %5 {offsets = [16, 0], sizes = [16, 128], strides = [1, 1]} : vector<80x128xf32> to vector<16x128xf32>
    %c0_8 = arith.constant 0 : index
    %c128 = arith.constant 128 : index
    %9 = vector.load %arg7[%c0_8, %c128] : memref<16x640xf32, #tpu.memory_space<vmem>>, vector<16x128xf32>
    tpu.vector_store %arg7[%c0_8, %c128], %8 {strides = array<i32>} : memref<16x640xf32, #tpu.memory_space<vmem>>, vector<16x128xf32>,
    %10 = vector.extract_strided_slice %5 {offsets = [32, 0], sizes = [16, 128], strides = [1, 1]} : vector<80x128xf32> to vector<16x128xf32>
    %c0_9 = arith.constant 0 : index
    %c256 = arith.constant 256 : index
    %11 = vector.load %arg7[%c0_9, %c256] : memref<16x640xf32, #tpu.memory_space<vmem>>, vector<16x128xf32>
    tpu.vector_store %arg7[%c0_9, %c256], %10 {strides = array<i32>} : memref<16x640xf32, #tpu.memory_space<vmem>>, vector<16x128xf32>,
    %12 = vector.extract_strided_slice %5 {offsets = [48, 0], sizes = [16, 128], strides = [1, 1]} : vector<80x128xf32> to vector<16x128xf32>
    %c0_10 = arith.constant 0 : index
    %c384 = arith.constant 384 : index
    %13 = vector.load %arg7[%c0_10, %c384] : memref<16x640xf32, #tpu.memory_space<vmem>>, vector<16x128xf32>
    tpu.vector_store %arg7[%c0_10, %c384], %12 {strides = array<i32>} : memref<16x640xf32, #tpu.memory_space<vmem>>, vector<16x128xf32>,
    %14 = vector.extract_strided_slice %5 {offsets = [64, 0], sizes = [16, 128], strides = [1, 1]} : vector<80x128xf32> to vector<16x128xf32>
    %c0_11 = arith.constant 0 : index
    %c512 = arith.constant 512 : index
    %15 = vector.load %arg7[%c0_11, %c512] : memref<16x640xf32, #tpu.memory_space<vmem>>, vector<16x128xf32>
    tpu.vector_store %arg7[%c0_11, %c512], %14 {strides = array<i32>} : memref<16x640xf32, #tpu.memory_space<vmem>>, vector<16x128xf32>,
    %c0_12 = arith.constant 0 : index
    %c0_13 = arith.constant 0 : index
    %16 = vector.load %arg7[%c0_12, %c0_13] : memref<16x640xf32, #tpu.memory_space<vmem>>, vector<16x640xf32>
    %c0_14 = arith.constant 0 : index
    %c0_15 = arith.constant 0 : index
    %17 = vector.load %arg4[%c0_14, %c0_15] : memref<640x24xf32, #tpu.memory_space<vmem>>, vector<640x24xf32>
    %cst_16 = arith.constant dense<0.000000e+00> : vector<16x24xf32>
    %18 = tpu.matmul %16, %17, %cst_16 {dimension_numbers = #tpu.dot_dimension_numbers<[1], [0], [0], [1], [0, 0, 1, 1], [], []>} : vector<16x640xf32>, vector<640x24xf32>, vector<16x24xf32> -> vector<16x24xf32>
    %c0_17 = arith.constant 0 : index
    %c0_18 = arith.constant 0 : index
    %19 = vector.load %arg5[%c0_17, %c0_18] : memref<1x24xf32, #tpu.memory_space<vmem>>, vector<1x24xf32>
    %20 = vector.broadcast %19 : vector<1x24xf32> to vector<16x24xf32>
    %21 = arith.addf %18, %20 : vector<16x24xf32>
    %cst_19 = arith.constant 0.000000e+00 : f32
    %22 = vector.broadcast %cst_19 : f32 to vector<16x24xf32>
    %23 = arith.maximumf %21, %22 : vector<16x24xf32>
    %c0_20 = arith.constant 0 : index
    %c0_21 = arith.constant 0 : index
    %c0_22 = arith.constant 0 : index
    %c0_23 = arith.constant 0 : index
    %24 = vector.load %arg6[%c0_20, %c0_21, %c0_22, %c0_23] : memref<1x1x16x24xf32, #tpu.memory_space<vmem>>, vector<1x1x16x24xf32>
    %25 = vector.shape_cast %24 : vector<1x1x16x24xf32> to vector<16x24xf32>
    %26 = vector.shape_cast %23 : vector<16x24xf32> to vector<1x1x16x24xf32>
    tpu.vector_store %arg6[%c0_20, %c0_21, %c0_22, %c0_23], %26 {strides = array<i32>} : memref<1x1x16x24xf32, #tpu.memory_space<vmem>>, vector<1x1x16x24xf32>,
    return
  }
  func.func @transform_0(%arg0: i32, %arg1: i32) -> (i32, i32, i32, i32) {
    %c0_i32 = arith.constant 0 : i32
    %c0_i32_0 = arith.constant 0 : i32
    %c0_i32_1 = arith.constant 0 : i32
    return %arg0, %arg1, %c0_i32, %c0_i32_0 : i32, i32, i32, i32
  }
  func.func @transform_1(%arg0: i32, %arg1: i32) -> (i32, i32) {
    %c0_i32 = arith.constant 0 : i32
    %c0_i32_0 = arith.constant 0 : i32
    %c0_i32_1 = arith.constant 0 : i32
    return %c0_i32, %c0_i32_0 : i32, i32
  }
  func.func @transform_2(%arg0: i32, %arg1: i32) -> (i32, i32) {
    %c0_i32 = arith.constant 0 : i32
    %c0_i32_0 = arith.constant 0 : i32
    %c0_i32_1 = arith.constant 0 : i32
    return %c0_i32, %c0_i32_0 : i32, i32
  }
  func.func @transform_3(%arg0: i32, %arg1: i32) -> (i32, i32) {
    %c0_i32 = arith.constant 0 : i32
    %c0_i32_0 = arith.constant 0 : i32
    %c0_i32_1 = arith.constant 0 : i32
    return %c0_i32, %c0_i32_0 : i32, i32
  }
  func.func @transform_4(%arg0: i32, %arg1: i32) -> (i32, i32, i32, i32) {
    %c0_i32 = arith.constant 0 : i32
    %c0_i32_0 = arith.constant 0 : i32
    %c0_i32_1 = arith.constant 0 : i32
    return %arg0, %arg1, %c0_i32, %c0_i32_0 : i32, i32, i32, i32
  }
}

</mosaic_0001>

<llo_original>
// kernel: model_forward.1
$region0: #{model_forward.1}
  #allocation0 [shape = 'u32[]', space=smem, size = 0x4, offset = 0x4, fixed_abs, tag = 'smem constant byte address 0x4 - core index']
  #allocation1 [shape = 'u32[144,128]{1,0:T(1,128)}', space=vmem, size = 0x12000, scoped, tag = 'internal scratch']
  #allocation2 [shape = 'f32[16,640]{1,0:T(8,128)}', space=vmem, size = 0xa000, scoped, tag = 'scratch operand']
  %s0 = inlined_call_operand.vmem [shape: f32[2,1,80,1152], index: 0, kind: input, shape index: {}]
  %s1 = inlined_call_operand.vmem [shape: f32[1152,128], index: 1, kind: input, shape index: {}]
  %s2 = inlined_call_operand.vmem [shape: f32[640,24], index: 2, kind: input, shape index: {}]
  %s3 = inlined_call_operand.vmem [shape: f32[1,24], index: 3, kind: input, shape index: {}]
  %s4 = inlined_call_operand.vmem [shape: f32[2,1,16,24], index: 4, kind: output, shape index: {}]
  %s5 = sld [smem:[#allocation0]]
  $region49: #{model_forward.1} parent=0
    _
  %s7 = ssub.s32 1, %s5
  %s8 = scalar_select 0, %s7, %s5
  loop: start=0, step=1, limit=4
  $region2: #{model_forward.1} parent=0 // loop_pre_header
    _
  $region3: #{model_forward.1} parent=0 // loop_header
    %s10 = sphi 0, %s14
    %p11 = scmp.ge.s32.totalorder %s10, 4
    %s17 = sphi 0, %s29
    %s18 = sphi 0, %s25
    %s19 = sphi 0, %s17
    %s20 = sphi 0, %s18
    %s21 = sphi 0, %s19
    %s22 = sphi 0, %s20
    %s34 = sphi 0, %s36
    %s37 = sphi 0, %s34
    %s38 = sphi 0, %s37
    %s54 = sphi 0, %s38
    %s58 = sphi 0, %s58
    %s60 = sphi 0, %s58
    %s61 = sphi 0, %s60
    %s75 = sphi 0, %s61
    %s79 = sphi 0, %s79
    %s81 = sphi 0, %s79
    %s82 = sphi 0, %s81
    %s96 = sphi 0, %s82
    %s100 = sphi 0, %s100
    %s102 = sphi 0, %s100
    %s103 = sphi 0, %s102
    %s117 = sphi 0, %s103
    %s125 = sphi 0, %s127
    %s128 = sphi 0, %s125
    %s129 = sphi 0, %s128
    %s145 = sphi 0, %s129
  $region4: #{model_forward.1} parent=0 // loop_header_branch
    %13 = sbr.rel (%p11) target = $region8
  $region5: #{model_forward.1} parent=0 // loop_body
    %s15 = ssub.s32 %s10, 1
    %s16 = ssub.s32 %s10, 2
    %s23 = sadd.s32 1, %s18
    %p24 = scmp.ge.s32.totalorder %s23, 1
    %s25 = scalar_select %p24, 0, %s23
    %s26 = sadd.s32 1, %s17
    %s27 = scalar_select %p24, %s26, %s17
    %p28 = scmp.ge.s32.totalorder %s27, 2
    %s29 = scalar_select %p28, 0, %s27
    %s30 = ssub.s32 %s17, %s29
    %s31 = ssub.s32 %s18, %s25
    %s32 = sor.u32 %s30, %s31
    %p33 = scmp.eq.s32.totalorder %s32, 0
    %s35 = sadd.s32 %s34, 1
    %s36 = scalar_select %p33, %s34, %s35
    %p39 = pneg %p33
    %p40 = scmp.eq.s32.totalorder %s10, 1
    %p41 = por %p39, %p40
    %p42 = scmp.ne.s32.totalorder %s34, %s37
    %p43 = scmp.eq.s32.totalorder %s10, 0
    %p44 = por %p42, %p43
    %p45 = scmp.ne.s32.totalorder %s34, %s37
    %p46 = scmp.eq.s32.totalorder %s15, 1
    %p47 = por %p45, %p46
    %p48 = scmp.ne.s32.totalorder %s37, %s38
    %p49 = scmp.eq.s32.totalorder %s15, 0
    %p50 = por %p48, %p49
    %p51 = scmp.ne.s32.totalorder %s37, %s38
    %p52 = scmp.eq.s32.totalorder %s16, 1
    %p53 = por %p51, %p52
    %p55 = scmp.ne.s32.totalorder %s38, %s54
    %p56 = scmp.eq.s32.totalorder %s16, 0
    %p57 = por %p55, %p56
    %s59 = sadd.s32 %s58, 1
    %p62 = scmp.eq.s32.totalorder %s10, 1
    %p63 = scmp.ne.s32.totalorder %s58, %s60
    %p64 = scmp.eq.s32.totalorder %s10, 0
    %p65 = por %p63, %p64
    %p66 = scmp.ne.s32.totalorder %s58, %s60
    %p67 = scmp.eq.s32.totalorder %s15, 1
    %p68 = por %p66, %p67
    %p69 = scmp.ne.s32.totalorder %s60, %s61
    %p70 = scmp.eq.s32.totalorder %s15, 0
    %p71 = por %p69, %p70
    %p72 = scmp.ne.s32.totalorder %s60, %s61
    %p73 = scmp.eq.s32.totalorder %s16, 1
    %p74 = por %p72, %p73
    %p76 = scmp.ne.s32.totalorder %s61, %s75
    %p77 = scmp.eq.s32.totalorder %s16, 0
    %p78 = por %p76, %p77
    %s80 = sadd.s32 %s79, 1
    %p83 = scmp.eq.s32.totalorder %s10, 1
    %p84 = scmp.ne.s32.totalorder %s79, %s81
    %p85 = scmp.eq.s32.totalorder %s10, 0
    %p86 = por %p84, %p85
    %p87 = scmp.ne.s32.totalorder %s79, %s81
    %p88 = scmp.eq.s32.totalorder %s15, 1
    %p89 = por %p87, %p88
    %p90 = scmp.ne.s32.totalorder %s81, %s82
    %p91 = scmp.eq.s32.totalorder %s15, 0
    %p92 = por %p90, %p91
    %p93 = scmp.ne.s32.totalorder %s81, %s82
    %p94 = scmp.eq.s32.totalorder %s16, 1
    %p95 = por %p93, %p94
    %p97 = scmp.ne.s32.totalorder %s82, %s96
    %p98 = scmp.eq.s32.totalorder %s16, 0
    %p99 = por %p97, %p98
    %s101 = sadd.s32 %s100, 1
    %p104 = scmp.eq.s32.totalorder %s10, 1
    %p105 = scmp.ne.s32.totalorder %s100, %s102
    %p106 = scmp.eq.s32.totalorder %s10, 0
    %p107 = por %p105, %p106
    %p108 = scmp.ne.s32.totalorder %s100, %s102
    %p109 = scmp.eq.s32.totalorder %s15, 1
    %p110 = por %p108, %p109
    %p111 = scmp.ne.s32.totalorder %s102, %s103
    %p112 = scmp.eq.s32.totalorder %s15, 0
    %p113 = por %p111, %p112
    %p114 = scmp.ne.s32.totalorder %s102, %s103
    %p115 = scmp.eq.s32.totalorder %s16, 1
    %p116 = por %p114, %p115
    %p118 = scmp.ne.s32.totalorder %s103, %s117
    %p119 = scmp.eq.s32.totalorder %s16, 0
    %p120 = por %p118, %p119
    %s121 = ssub.s32 %s17, %s29
    %s122 = ssub.s32 %s18, %s25
    %s123 = sor.u32 %s121, %s122
    %p124 = scmp.eq.s32.totalorder %s123, 0
    %s126 = sadd.s32 %s125, 1
    %s127 = scalar_select %p124, %s125, %s126
    %p130 = pneg %p124
    %p131 = scmp.eq.s32.totalorder %s10, 1
    %p132 = por %p130, %p131
    %p133 = scmp.ne.s32.totalorder %s125, %s128
    %p134 = scmp.eq.s32.totalorder %s10, 0
    %p135 = por %p133, %p134
    %p136 = scmp.ne.s32.totalorder %s125, %s128
    %p137 = scmp.eq.s32.totalorder %s15, 1
    %p138 = por %p136, %p137
    %p139 = scmp.ne.s32.totalorder %s128, %s129
    %p140 = scmp.eq.s32.totalorder %s15, 0
    %p141 = por %p139, %p140
    %p142 = scmp.ne.s32.totalorder %s128, %s129
    %p143 = scmp.eq.s32.totalorder %s16, 1
    %p144 = por %p142, %p143
    %p146 = scmp.ne.s32.totalorder %s129, %s145
    %p147 = scmp.eq.s32.totalorder %s16, 0
    %p148 = por %p146, %p147
    %p149 = scmp.le.s32.totalorder 1, %s10
    %p150 = scmp.lt.s32.totalorder %s10, 3
    %p151 = pnand %p149, %p150
    %p152 = pneg %p151
    // Predicated region
    $region9: #{model_forward.1} parent=5 // pred_check
      _
    $region10: #{model_forward.1} parent=5 // pred_check_branch
      %154 = sbr.rel (%p151) target = $region12
    $region11: #{model_forward.1} parent=5 // pred_region
      %s155 = ssub.s32 %s10, 1
      // Predicated region
      $region13: #{model_forward.1} parent=11 // pred_check
        %p156 = pneg %p71
      $region14: #{model_forward.1} parent=11 // pred_check_branch
        %158 = sbr.rel (%p156) target = $region16
      $region15: #{model_forward.1} parent=11 // pred_region
        _
      $region16: #{model_forward.1} parent=11 // pred_fallthru
        _
      // Predicated region
      $region17: #{model_forward.1} parent=11 // pred_check
        %p159 = pneg %p92
      $region18: #{model_forward.1} parent=11 // pred_check_branch
        %161 = sbr.rel (%p159) target = $region20
      $region19: #{model_forward.1} parent=11 // pred_region
        _
      $region20: #{model_forward.1} parent=11 // pred_fallthru
        _
      // Predicated region
      $region21: #{model_forward.1} parent=11 // pred_check
        %p162 = pneg %p113
      $region22: #{model_forward.1} parent=11 // pred_check_branch
        %164 = sbr.rel (%p162) target = $region24
      $region23: #{model_forward.1} parent=11 // pred_region
        _
      $region24: #{model_forward.1} parent=11 // pred_fallthru
        _
    $region12: #{model_forward.1} parent=5 // pred_fallthru
      _
    %p165 = scmp.lt.s32.totalorder %s10, 2
    // Predicated region
    $region25: #{model_forward.1} parent=5 // pred_check
      %p166 = pneg %p165
    $region26: #{model_forward.1} parent=5 // pred_check_branch
      %168 = sbr.rel (%p166) target = $region28
    $region27: #{model_forward.1} parent=5 // pred_region
      // Predicated region
      $region29: #{model_forward.1} parent=27 // pred_check
        %p169 = pneg %p44
      $region30: #{model_forward.1} parent=27 // pred_check_branch
        %171 = sbr.rel (%p169) target = $region32
      $region31: #{model_forward.1} parent=27 // pred_region
        %p172 = scmp.lt.s32.totalorder %s17, 1
        %s173 = scalar_select %p172, %s17, 1
        %p174 = scmp.lt.s32.totalorder %s18, 0
        %s175 = scalar_select %p174, %s18, 0
        %s176 = smul.addr %s175, 90
        %s177 = smul.addr %s173, 90
        %s178 = sadd.s32 %s176, %s177
        %s179 = smul.addr %s178, 8
        %s180 = scalar_lea.vmem %s0, %s179
      $region32: #{model_forward.1} parent=27 // pred_fallthru
        _
    $region28: #{model_forward.1} parent=5 // pred_fallthru
      _
    %p181 = scmp.le.s32.totalorder 1, %s10
    %p182 = scmp.lt.s32.totalorder %s10, 3
    %p183 = pnand %p181, %p182
    %p184 = pneg %p183
    // Predicated region
    $region33: #{model_forward.1} parent=5 // pred_check
      _
    $region34: #{model_forward.1} parent=5 // pred_check_branch
      %186 = sbr.rel (%p183) target = $region36
    $region35: #{model_forward.1} parent=5 // pred_region
      %s187 = ssub.s32 %s10, 1
      %p188 = scmp.lt.s32.totalorder %s19, 1
      %s189 = scalar_select %p188, %s19, 1
      %p190 = scmp.lt.s32.totalorder %s20, 0
      %s191 = scalar_select %p190, %s20, 0
      %s192 = smul.addr %s191, 90
      %s193 = smul.addr %s189, 90
      %s194 = sadd.s32 %s192, %s193
      %s195 = smul.addr %s194, 8
      %s196 = scalar_lea.vmem %s0, %s195
      %p197 = pneg %p50
      %p198 = pneg %p47
      %p199 = pneg %p71
      %p200 = pneg %p68
      %p201 = pneg %p92
      %p202 = pneg %p89
      %p203 = pneg %p113
      %p204 = pneg %p110
      %p205 = pneg %p141
      %p206 = pneg %p138
      %p207 = scmp.lt.s32.totalorder %s19, 1
      %s208 = scalar_select %p207, %s19, 1
      %p209 = scmp.lt.s32.totalorder %s20, 0
      %s210 = scalar_select %p209, %s20, 0
      %s211 = smul.addr %s210, 2
      %s212 = smul.addr %s208, 2
      %s213 = sadd.s32 %s211, %s212
      %s214 = smul.addr %s213, 8
      %s215 = scalar_lea.vmem %s4, %s214
      %p216 = scmp.lt.s32.totalorder %s19, 1
      %s217 = scalar_select %p216, %s19, 1
      %p218 = scmp.lt.s32.totalorder %s20, 0
      %s219 = scalar_select %p218, %s20, 0
      %s220 = smul.addr %s219, 90
      %s221 = smul.addr %s217, 90
      %s222 = sadd.s32 %s220, %s221
      %s223 = smul.addr %s222, 8
      %s224 = scalar_lea.vmem %s0, %s223
      %p225 = scmp.lt.s32.totalorder %s19, 1
      %s226 = scalar_select %p225, %s19, 1
      %p227 = scmp.lt.s32.totalorder %s20, 0
      %s228 = scalar_select %p227, %s20, 0
      %s229 = smul.addr %s228, 2
      %s230 = smul.addr %s226, 2
      %s231 = sadd.s32 %s229, %s230
      %s232 = smul.addr %s231, 8
      %s233 = scalar_lea.vmem %s4, %s232
      %v234 = vld [vmem:[%s224] sm:$0xff]
      %v235 = vld [vmem:[%s224 + $0x8] sm:$0xff]
      %v236 = vld [vmem:[%s224 + $0x10] sm:$0xff]
      %v237 = vld [vmem:[%s224 + $0x18] sm:$0xff]
      %v238 = vld [vmem:[%s224 + $0x20] sm:$0xff]
      %v239 = vld [vmem:[%s224 + $0x28] sm:$0xff]
      %v240 = vld [vmem:[%s224 + $0x30] sm:$0xff]
      %v241 = vld [vmem:[%s224 + $0x38] sm:$0xff]
      %v242 = vld [vmem:[%s224 + $0x40] sm:$0xff]
      %v243 = vld [vmem:[%s224 + $0x48] sm:$0xff]
      %v244 = vld [vmem:[%s224 + $0x50] sm:$0xff]
      %v245 = vld [vmem:[%s224 + $0x58] sm:$0xff]
      %v246 = vld [vmem:[%s224 + $0x60] sm:$0xff]
      %v247 = vld [vmem:[%s224 + $0x68] sm:$0xff]
      %v248 = vld [vmem:[%s224 + $0x70] sm:$0xff]
      %v249 = vld [vmem:[%s224 + $0x78] sm:$0xff]
      %v250 = vld [vmem:[%s224 + $0x80] sm:$0xff]
      %v251 = vld [vmem:[%s224 + $0x88] sm:$0xff]
      %v252 = vld [vmem:[%s224 + $0x90] sm:$0xff]
      %v253 = vld [vmem:[%s224 + $0x98] sm:$0xff]
      %v254 = vld [vmem:[%s224 + $0xa0] sm:$0xff]
      %v255 = vld [vmem:[%s224 + $0xa8] sm:$0xff]
      %v256 = vld [vmem:[%s224 + $0xb0] sm:$0xff]
      %v257 = vld [vmem:[%s224 + $0xb8] sm:$0xff]
      %v258 = vld [vmem:[%s224 + $0xc0] sm:$0xff]
      %v259 = vld [vmem:[%s224 + $0xc8] sm:$0xff]
      %v260 = vld [vmem:[%s224 + $0xd0] sm:$0xff]
      %v261 = vld [vmem:[%s224 + $0xd8] sm:$0xff]
      %v262 = vld [vmem:[%s224 + $0xe0] sm:$0xff]
      %v263 = vld [vmem:[%s224 + $0xe8] sm:$0xff]
      %v264 = vld [vmem:[%s224 + $0xf0] sm:$0xff]
      %v265 = vld [vmem:[%s224 + $0xf8] sm:$0xff]
      %v266 = vld [vmem:[%s224 + $0x100] sm:$0xff]
      %v267 = vld [vmem:[%s224 + $0x108] sm:$0xff]
      %v268 = vld [vmem:[%s224 + $0x110] sm:$0xff]
      %v269 = vld [vmem:[%s224 + $0x118] sm:$0xff]
      %v270 = vld [vmem:[%s224 + $0x120] sm:$0xff]
      %v271 = vld [vmem:[%s224 + $0x128] sm:$0xff]
      %v272 = vld [vmem:[%s224 + $0x130] sm:$0xff]
      %v273 = vld [vmem:[%s224 + $0x138] sm:$0xff]
      %v274 = vld [vmem:[%s224 + $0x140] sm:$0xff]
      %v275 = vld [vmem:[%s224 + $0x148] sm:$0xff]
      %v276 = vld [vmem:[%s224 + $0x150] sm:$0xff]
      %v277 = vld [vmem:[%s224 + $0x158] sm:$0xff]
      %v278 = vld [vmem:[%s224 + $0x160] sm:$0xff]
      %v279 = vld [vmem:[%s224 + $0x168] sm:$0xff]
      %v280 = vld [vmem:[%s224 + $0x170] sm:$0xff]
      %v281 = vld [vmem:[%s224 + $0x178] sm:$0xff]
      %v282 = vld [vmem:[%s224 + $0x180] sm:$0xff]
      %v283 = vld [vmem:[%s224 + $0x188] sm:$0xff]
      %v284 = vld [vmem:[%s224 + $0x190] sm:$0xff]
      %v285 = vld [vmem:[%s224 + $0x198] sm:$0xff]
      %v286 = vld [vmem:[%s224 + $0x1a0] sm:$0xff]
      %v287 = vld [vmem:[%s224 + $0x1a8] sm:$0xff]
      %v288 = vld [vmem:[%s224 + $0x1b0] sm:$0xff]
      %v289 = vld [vmem:[%s224 + $0x1b8] sm:$0xff]
      %v290 = vld [vmem:[%s224 + $0x1c0] sm:$0xff]
      %v291 = vld [vmem:[%s224 + $0x1c8] sm:$0xff]
      %v292 = vld [vmem:[%s224 + $0x1d0] sm:$0xff]
      %v293 = vld [vmem:[%s224 + $0x1d8] sm:$0xff]
      %v294 = vld [vmem:[%s224 + $0x1e0] sm:$0xff]
      %v295 = vld [vmem:[%s224 + $0x1e8] sm:$0xff]
      %v296 = vld [vmem:[%s224 + $0x1f0] sm:$0xff]
      %v297 = vld [vmem:[%s224 + $0x1f8] sm:$0xff]
      %v298 = vld [vmem:[%s224 + $0x200] sm:$0xff]
      %v299 = vld [vmem:[%s224 + $0x208] sm:$0xff]
      %v300 = vld [vmem:[%s224 + $0x210] sm:$0xff]
      %v301 = vld [vmem:[%s224 + $0x218] sm:$0xff]
      %v302 = vld [vmem:[%s224 + $0x220] sm:$0xff]
      %v303 = vld [vmem:[%s224 + $0x228] sm:$0xff]
      %v304 = vld [vmem:[%s224 + $0x230] sm:$0xff]
      %v305 = vld [vmem:[%s224 + $0x238] sm:$0xff]
      %v306 = vld [vmem:[%s224 + $0x240] sm:$0xff]
      %v307 = vld [vmem:[%s224 + $0x248] sm:$0xff]
      %v308 = vld [vmem:[%s224 + $0x250] sm:$0xff]
      %v309 = vld [vmem:[%s224 + $0x258] sm:$0xff]
      %v310 = vld [vmem:[%s224 + $0x260] sm:$0xff]
      %v311 = vld [vmem:[%s224 + $0x268] sm:$0xff]
      %v312 = vld [vmem:[%s224 + $0x270] sm:$0xff]
      %v313 = vld [vmem:[%s224 + $0x278] sm:$0xff]
      %v314 = vld [vmem:[%s224 + $0x280] sm:$0xff]
      %v315 = vld [vmem:[%s224 + $0x288] sm:$0xff]
      %v316 = vld [vmem:[%s224 + $0x290] sm:$0xff]
      %v317 = vld [vmem:[%s224 + $0x298] sm:$0xff]
      %v318 = vld [vmem:[%s224 + $0x2a0] sm:$0xff]
      %v319 = vld [vmem:[%s224 + $0x2a8] sm:$0xff]
      %v320 = vld [vmem:[%s224 + $0x2b0] sm:$0xff]
      %v321 = vld [vmem:[%s224 + $0x2b8] sm:$0xff]
      %v322 = vld [vmem:[%s224 + $0x2c0] sm:$0xff]
      %v323 = vld [vmem:[%s224 + $0x2c8] sm:$0xff]
      %v324 = vld [vmem:[%s1] sm:$0xff]
      %v325 = vld [vmem:[%s1 + $0x8] sm:$0xff]
      %v326 = vld [vmem:[%s1 + $0x10] sm:$0xff]
      %v327 = vld [vmem:[%s1 + $0x18] sm:$0xff]
      %v328 = vld [vmem:[%s1 + $0x20] sm:$0xff]
      %v329 = vld [vmem:[%s1 + $0x28] sm:$0xff]
      %v330 = vld [vmem:[%s1 + $0x30] sm:$0xff]
      %v331 = vld [vmem:[%s1 + $0x38] sm:$0xff]
      %v332 = vld [vmem:[%s1 + $0x40] sm:$0xff]
      %v333 = vld [vmem:[%s1 + $0x48] sm:$0xff]
      %v334 = vld [vmem:[%s1 + $0x50] sm:$0xff]
      %v335 = vld [vmem:[%s1 + $0x58] sm:$0xff]
      %v336 = vld [vmem:[%s1 + $0x60] sm:$0xff]
      %v337 = vld [vmem:[%s1 + $0x68] sm:$0xff]
      %v338 = vld [vmem:[%s1 + $0x70] sm:$0xff]
      %v339 = vld [vmem:[%s1 + $0x78] sm:$0xff]
      %v340 = vld [vmem:[%s1 + $0x80] sm:$0xff]
      %v341 = vld [vmem:[%s1 + $0x88] sm:$0xff]
      %v342 = vld [vmem:[%s1 + $0x90] sm:$0xff]
      %v343 = vld [vmem:[%s1 + $0x98] sm:$0xff]
      %v344 = vld [vmem:[%s1 + $0xa0] sm:$0xff]
      %v345 = vld [vmem:[%s1 + $0xa8] sm:$0xff]
      %v346 = vld [vmem:[%s1 + $0xb0] sm:$0xff]
      %v347 = vld [vmem:[%s1 + $0xb8] sm:$0xff]
      %v348 = vld [vmem:[%s1 + $0xc0] sm:$0xff]
      %v349 = vld [vmem:[%s1 + $0xc8] sm:$0xff]
      %v350 = vld [vmem:[%s1 + $0xd0] sm:$0xff]
      %v351 = vld [vmem:[%s1 + $0xd8] sm:$0xff]
      %v352 = vld [vmem:[%s1 + $0xe0] sm:$0xff]
      %v353 = vld [vmem:[%s1 + $0xe8] sm:$0xff]
      %v354 = vld [vmem:[%s1 + $0xf0] sm:$0xff]
      %v355 = vld [vmem:[%s1 + $0xf8] sm:$0xff]
      %v356 = vld [vmem:[%s1 + $0x100] sm:$0xff]
      %v357 = vld [vmem:[%s1 + $0x108] sm:$0xff]
      %v358 = vld [vmem:[%s1 + $0x110] sm:$0xff]
      %v359 = vld [vmem:[%s1 + $0x118] sm:$0xff]
      %v360 = vld [vmem:[%s1 + $0x120] sm:$0xff]
      %v361 = vld [vmem:[%s1 + $0x128] sm:$0xff]
      %v362 = vld [vmem:[%s1 + $0x130] sm:$0xff]
      %v363 = vld [vmem:[%s1 + $0x138] sm:$0xff]
      %v364 = vld [vmem:[%s1 + $0x140] sm:$0xff]
      %v365 = vld [vmem:[%s1 + $0x148] sm:$0xff]
      %v366 = vld [vmem:[%s1 + $0x150] sm:$0xff]
      %v367 = vld [vmem:[%s1 + $0x158] sm:$0xff]
      %v368 = vld [vmem:[%s1 + $0x160] sm:$0xff]
      %v369 = vld [vmem:[%s1 + $0x168] sm:$0xff]
      %v370 = vld [vmem:[%s1 + $0x170] sm:$0xff]
      %v371 = vld [vmem:[%s1 + $0x178] sm:$0xff]
      %v372 = vld [vmem:[%s1 + $0x180] sm:$0xff]
      %v373 = vld [vmem:[%s1 + $0x188] sm:$0xff]
      %v374 = vld [vmem:[%s1 + $0x190] sm:$0xff]
      %v375 = vld [vmem:[%s1 + $0x198] sm:$0xff]
      %v376 = vld [vmem:[%s1 + $0x1a0] sm:$0xff]
      %v377 = vld [vmem:[%s1 + $0x1a8] sm:$0xff]
      %v378 = vld [vmem:[%s1 + $0x1b0] sm:$0xff]
      %v379 = vld [vmem:[%s1 + $0x1b8] sm:$0xff]
      %v380 = vld [vmem:[%s1 + $0x1c0] sm:$0xff]
      %v381 = vld [vmem:[%s1 + $0x1c8] sm:$0xff]
      %v382 = vld [vmem:[%s1 + $0x1d0] sm:$0xff]
      %v383 = vld [vmem:[%s1 + $0x1d8] sm:$0xff]
      %v384 = vld [vmem:[%s1 + $0x1e0] sm:$0xff]
      %v385 = vld [vmem:[%s1 + $0x1e8] sm:$0xff]
      %v386 = vld [vmem:[%s1 + $0x1f0] sm:$0xff]
      %v387 = vld [vmem:[%s1 + $0x1f8] sm:$0xff]
      %v388 = vld [vmem:[%s1 + $0x200] sm:$0xff]
      %v389 = vld [vmem:[%s1 + $0x208] sm:$0xff]
      %v390 = vld [vmem:[%s1 + $0x210] sm:$0xff]
      %v391 = vld [vmem:[%s1 + $0x218] sm:$0xff]
      %v392 = vld [vmem:[%s1 + $0x220] sm:$0xff]
      %v393 = vld [vmem:[%s1 + $0x228] sm:$0xff]
      %v394 = vld [vmem:[%s1 + $0x230] sm:$0xff]
      %v395 = vld [vmem:[%s1 + $0x238] sm:$0xff]
      %v396 = vld [vmem:[%s1 + $0x240] sm:$0xff]
      %v397 = vld [vmem:[%s1 + $0x248] sm:$0xff]
      %v398 = vld [vmem:[%s1 + $0x250] sm:$0xff]
      %v399 = vld [vmem:[%s1 + $0x258] sm:$0xff]
      %v400 = vld [vmem:[%s1 + $0x260] sm:$0xff]
      %v401 = vld [vmem:[%s1 + $0x268] sm:$0xff]
      %v402 = vld [vmem:[%s1 + $0x270] sm:$0xff]
      %v403 = vld [vmem:[%s1 + $0x278] sm:$0xff]
      %v404 = vld [vmem:[%s1 + $0x280] sm:$0xff]
      %v405 = vld [vmem:[%s1 + $0x288] sm:$0xff]
      %v406 = vld [vmem:[%s1 + $0x290] sm:$0xff]
      %v407 = vld [vmem:[%s1 + $0x298] sm:$0xff]
      %v408 = vld [vmem:[%s1 + $0x2a0] sm:$0xff]
      %v409 = vld [vmem:[%s1 + $0x2a8] sm:$0xff]
      %v410 = vld [vmem:[%s1 + $0x2b0] sm:$0xff]
      %v411 = vld [vmem:[%s1 + $0x2b8] sm:$0xff]
      %v412 = vld [vmem:[%s1 + $0x2c0] sm:$0xff]
      %v413 = vld [vmem:[%s1 + $0x2c8] sm:$0xff]
      %v414 = vld [vmem:[%s1 + $0x2d0] sm:$0xff]
      %v415 = vld [vmem:[%s1 + $0x2d8] sm:$0xff]
      %v416 = vld [vmem:[%s1 + $0x2e0] sm:$0xff]
      %v417 = vld [vmem:[%s1 + $0x2e8] sm:$0xff]
      %v418 = vld [vmem:[%s1 + $0x2f0] sm:$0xff]
      %v419 = vld [vmem:[%s1 + $0x2f8] sm:$0xff]
      %v420 = vld [vmem:[%s1 + $0x300] sm:$0xff]
      %v421 = vld [vmem:[%s1 + $0x308] sm:$0xff]
      %v422 = vld [vmem:[%s1 + $0x310] sm:$0xff]
      %v423 = vld [vmem:[%s1 + $0x318] sm:$0xff]
      %v424 = vld [vmem:[%s1 + $0x320] sm:$0xff]
      %v425 = vld [vmem:[%s1 + $0x328] sm:$0xff]
      %v426 = vld [vmem:[%s1 + $0x330] sm:$0xff]
      %v427 = vld [vmem:[%s1 + $0x338] sm:$0xff]
      %v428 = vld [vmem:[%s1 + $0x340] sm:$0xff]
      %v429 = vld [vmem:[%s1 + $0x348] sm:$0xff]
      %v430 = vld [vmem:[%s1 + $0x350] sm:$0xff]
      %v431 = vld [vmem:[%s1 + $0x358] sm:$0xff]
      %v432 = vld [vmem:[%s1 + $0x360] sm:$0xff]
      %v433 = vld [vmem:[%s1 + $0x368] sm:$0xff]
      %v434 = vld [vmem:[%s1 + $0x370] sm:$0xff]
      %v435 = vld [vmem:[%s1 + $0x378] sm:$0xff]
      %v436 = vld [vmem:[%s1 + $0x380] sm:$0xff]
      %v437 = vld [vmem:[%s1 + $0x388] sm:$0xff]
      %v438 = vld [vmem:[%s1 + $0x390] sm:$0xff]
      %v439 = vld [vmem:[%s1 + $0x398] sm:$0xff]
      %v440 = vld [vmem:[%s1 + $0x3a0] sm:$0xff]
      %v441 = vld [vmem:[%s1 + $0x3a8] sm:$0xff]
      %v442 = vld [vmem:[%s1 + $0x3b0] sm:$0xff]
      %v443 = vld [vmem:[%s1 + $0x3b8] sm:$0xff]
      %v444 = vld [vmem:[%s1 + $0x3c0] sm:$0xff]
      %v445 = vld [vmem:[%s1 + $0x3c8] sm:$0xff]
      %v446 = vld [vmem:[%s1 + $0x3d0] sm:$0xff]
      %v447 = vld [vmem:[%s1 + $0x3d8] sm:$0xff]
      %v448 = vld [vmem:[%s1 + $0x3e0] sm:$0xff]
      %v449 = vld [vmem:[%s1 + $0x3e8] sm:$0xff]
      %v450 = vld [vmem:[%s1 + $0x3f0] sm:$0xff]
      %v451 = vld [vmem:[%s1 + $0x3f8] sm:$0xff]
      %v452 = vld [vmem:[%s1 + $0x400] sm:$0xff]
      %v453 = vld [vmem:[%s1 + $0x408] sm:$0xff]
      %v454 = vld [vmem:[%s1 + $0x410] sm:$0xff]
      %v455 = vld [vmem:[%s1 + $0x418] sm:$0xff]
      %v456 = vld [vmem:[%s1 + $0x420] sm:$0xff]
      %v457 = vld [vmem:[%s1 + $0x428] sm:$0xff]
      %v458 = vld [vmem:[%s1 + $0x430] sm:$0xff]
      %v459 = vld [vmem:[%s1 + $0x438] sm:$0xff]
      %v460 = vld [vmem:[%s1 + $0x440] sm:$0xff]
      %v461 = vld [vmem:[%s1 + $0x448] sm:$0xff]
      %v462 = vld [vmem:[%s1 + $0x450] sm:$0xff]
      %v463 = vld [vmem:[%s1 + $0x458] sm:$0xff]
      %v464 = vld [vmem:[%s1 + $0x460] sm:$0xff]
      %v465 = vld [vmem:[%s1 + $0x468] sm:$0xff]
      %v466 = vld [vmem:[%s1 + $0x470] sm:$0xff]
      %v467 = vld [vmem:[%s1 + $0x478] sm:$0xff]
      %468 = vmatprep.subr.mxu0 0.0
      %469 = vmatpush1.msra.mxu0 %v339
      %470 = vmatprep.subr.mxu0 0.0
      %471 = vmatpush1.msra.mxu0 %v338
      %472 = vmatprep.subr.mxu0 0.0
      %473 = vmatpush1.msra.mxu0 %v337
      %474 = vmatprep.subr.mxu0 0.0
      %475 = vmatpush1.msra.mxu0 %v336
      %476 = vmatprep.subr.mxu0 0.0
      %477 = vmatpush1.msra.mxu0 %v335
      %478 = vmatprep.subr.mxu0 0.0
      %479 = vmatpush1.msra.mxu0 %v334
      %480 = vmatprep.subr.mxu0 0.0
      %481 = vmatpush1.msra.mxu0 %v333
      %482 = vmatprep.subr.mxu0 0.0
      %483 = vmatpush1.msra.mxu0 %v332
      %484 = vmatprep.subr.mxu0 0.0
      %485 = vmatpush1.msra.mxu0 %v331
      %486 = vmatprep.subr.mxu0 0.0
      %487 = vmatpush1.msra.mxu0 %v330
      %488 = vmatprep.subr.mxu0 0.0
      %489 = vmatpush1.msra.mxu0 %v329
      %490 = vmatprep.subr.mxu0 0.0
      %491 = vmatpush1.msra.mxu0 %v328
      %492 = vmatprep.subr.mxu0 0.0
      %493 = vmatpush1.msra.mxu0 %v327
      %494 = vmatprep.subr.mxu0 0.0
      %495 = vmatpush1.msra.mxu0 %v326
      %496 = vmatprep.subr.mxu0 0.0
      %497 = vmatpush1.msra.mxu0 %v325
      %498 = vmatprep.subr.mxu0 0.0
      %499 = vmatpush1.msra.mxu0 %v324
      %500 = vmatprep.subr.mxu0 0.0
      %501 = vmatpush2.msra.mxu0 %v355
      %502 = vmatprep.subr.mxu0 0.0
      %503 = vmatpush2.msra.mxu0 %v354
      %504 = vmatprep.subr.mxu0 0.0
      %505 = vmatpush2.msra.mxu0 %v353
      %506 = vmatprep.subr.mxu0 0.0
      %507 = vmatpush2.msra.mxu0 %v352
      %508 = vmatprep.subr.mxu0 0.0
      %509 = vmatpush2.msra.mxu0 %v351
      %510 = vmatprep.subr.mxu0 0.0
      %511 = vmatpush2.msra.mxu0 %v350
      %512 = vmatprep.subr.mxu0 0.0
      %513 = vmatpush2.msra.mxu0 %v349
      %514 = vmatprep.subr.mxu0 0.0
      %515 = vmatpush2.msra.mxu0 %v348
      %516 = vmatprep.subr.mxu0 0.0
      %517 = vmatpush2.msra.mxu0 %v347
      %518 = vmatprep.subr.mxu0 0.0
      %519 = vmatpush2.msra.mxu0 %v346
      %520 = vmatprep.subr.mxu0 0.0
      %521 = vmatpush2.msra.mxu0 %v345
      %522 = vmatprep.subr.mxu0 0.0
      %523 = vmatpush2.msra.mxu0 %v344
      %524 = vmatprep.subr.mxu0 0.0
      %525 = vmatpush2.msra.mxu0 %v343
      %526 = vmatprep.subr.mxu0 0.0
      %527 = vmatpush2.msra.mxu0 %v342
      %528 = vmatprep.subr.mxu0 0.0
      %529 = vmatpush2.msra.mxu0 %v341
      %530 = vmatprep.subr.mxu0 0.0
      %531 = vmatpush2.msra.mxu0 %v340
      %532 = vmatprep.mubr.f32.mxu0 %v235
      %533 = vmatmul.mubr.f32.gmra.mxu0 %v234
      %v534 = vpop.f32.mrf.mxu0
      %v535 = vadd.f32 0.0, %v534
      %v536 = vpop.f32.mrf.mxu0
      %537 = vmatprep.mubr.f32.mxu0 %v244
      %538 = vmatmul.mubr.f32.gmra.mxu0 %v243
      %v539 = vpop.f32.mrf.mxu0
      %v540 = vadd.f32 0.0, %v539
      %v541 = vpop.f32.mrf.mxu0
      %542 = vmatprep.mubr.f32.mxu0 %v253
      %543 = vmatmul.mubr.f32.gmra.mxu0 %v252
      %v544 = vpop.f32.mrf.mxu0
      %v545 = vadd.f32 0.0, %v544
      %v546 = vpop.f32.mrf.mxu0
      %547 = vmatprep.mubr.f32.mxu0 %v262
      %548 = vmatmul.mubr.f32.gmra.mxu0 %v261
      %v549 = vpop.f32.mrf.mxu0
      %v550 = vadd.f32 0.0, %v549
      %v551 = vpop.f32.mrf.mxu0
      %552 = vmatprep.mubr.f32.mxu0 %v271
      %553 = vmatmul.mubr.f32.gmra.mxu0 %v270
      %v554 = vpop.f32.mrf.mxu0
      %v555 = vadd.f32 0.0, %v554
      %v556 = vpop.f32.mrf.mxu0
      %557 = vmatprep.mubr.f32.mxu0 %v280
      %558 = vmatmul.mubr.f32.gmra.mxu0 %v279
      %v559 = vpop.f32.mrf.mxu0
      %v560 = vadd.f32 0.0, %v559
      %v561 = vpop.f32.mrf.mxu0
      %562 = vmatprep.mubr.f32.mxu0 %v289
      %563 = vmatmul.mubr.f32.gmra.mxu0 %v288
      %v564 = vpop.f32.mrf.mxu0
      %v565 = vadd.f32 0.0, %v564
      %v566 = vpop.f32.mrf.mxu0
      %567 = vmatprep.mubr.f32.mxu0 %v298
      %568 = vmatmul.mubr.f32.gmra.mxu0 %v297
      %v569 = vpop.f32.mrf.mxu0
      %v570 = vadd.f32 0.0, %v569
      %v571 = vpop.f32.mrf.mxu0
      %572 = vmatprep.mubr.f32.mxu0 %v307
      %573 = vmatmul.mubr.f32.gmra.mxu0 %v306
      %v574 = vpop.f32.mrf.mxu0
      %v575 = vadd.f32 0.0, %v574
      %v576 = vpop.f32.mrf.mxu0
      %577 = vmatprep.mubr.f32.mxu0 %v316
      %578 = vmatmul.mubr.f32.gmra.mxu0 %v315
      %v579 = vpop.f32.mrf.mxu0
      %v580 = vadd.f32 0.0, %v579
      %v581 = vpop.f32.mrf.mxu0
      %582 = vdwg.mxu0
      %583 = vmatprep.subr.mxu0 0.0
      %584 = vmatpush1.msra.mxu0 %v371
      %585 = vmatprep.subr.mxu0 0.0
      %586 = vmatpush1.msra.mxu0 %v370
      %587 = vmatprep.subr.mxu0 0.0
      %588 = vmatpush1.msra.mxu0 %v369
      %589 = vmatprep.subr.mxu0 0.0
      %590 = vmatpush1.msra.mxu0 %v368
      %591 = vmatprep.subr.mxu0 0.0
      %592 = vmatpush1.msra.mxu0 %v367
      %593 = vmatprep.subr.mxu0 0.0
      %594 = vmatpush1.msra.mxu0 %v366
      %595 = vmatprep.subr.mxu0 0.0
      %596 = vmatpush1.msra.mxu0 %v365
      %597 = vmatprep.subr.mxu0 0.0
      %598 = vmatpush1.msra.mxu0 %v364
      %599 = vmatprep.subr.mxu0 0.0
      %600 = vmatpush1.msra.mxu0 %v363
      %601 = vmatprep.subr.mxu0 0.0
      %602 = vmatpush1.msra.mxu0 %v362
      %603 = vmatprep.subr.mxu0 0.0
      %604 = vmatpush1.msra.mxu0 %v361
      %605 = vmatprep.subr.mxu0 0.0
      %606 = vmatpush1.msra.mxu0 %v360
      %607 = vmatprep.subr.mxu0 0.0
      %608 = vmatpush1.msra.mxu0 %v359
      %609 = vmatprep.subr.mxu0 0.0
      %610 = vmatpush1.msra.mxu0 %v358
      %611 = vmatprep.subr.mxu0 0.0
      %612 = vmatpush1.msra.mxu0 %v357
      %613 = vmatprep.subr.mxu0 0.0
      %614 = vmatpush1.msra.mxu0 %v356
      %615 = vmatprep.subr.mxu0 0.0
      %616 = vmatpush2.msra.mxu0 %v387
      %617 = vmatprep.subr.mxu0 0.0
      %618 = vmatpush2.msra.mxu0 %v386
      %619 = vmatprep.subr.mxu0 0.0
      %620 = vmatpush2.msra.mxu0 %v385
      %621 = vmatprep.subr.mxu0 0.0
      %622 = vmatpush2.msra.mxu0 %v384
      %623 = vmatprep.subr.mxu0 0.0
      %624 = vmatpush2.msra.mxu0 %v383
      %625 = vmatprep.subr.mxu0 0.0
      %626 = vmatpush2.msra.mxu0 %v382
      %627 = vmatprep.subr.mxu0 0.0
      %628 = vmatpush2.msra.mxu0 %v381
      %629 = vmatprep.subr.mxu0 0.0
      %630 = vmatpush2.msra.mxu0 %v380
      %631 = vmatprep.subr.mxu0 0.0
      %632 = vmatpush2.msra.mxu0 %v379
      %633 = vmatprep.subr.mxu0 0.0
      %634 = vmatpush2.msra.mxu0 %v378
      %635 = vmatprep.subr.mxu0 0.0
      %636 = vmatpush2.msra.mxu0 %v377
      %637 = vmatprep.subr.mxu0 0.0
      %638 = vmatpush2.msra.mxu0 %v376
      %639 = vmatprep.subr.mxu0 0.0
      %640 = vmatpush2.msra.mxu0 %v375
      %641 = vmatprep.subr.mxu0 0.0
      %642 = vmatpush2.msra.mxu0 %v374
      %643 = vmatprep.subr.mxu0 0.0
      %644 = vmatpush2.msra.mxu0 %v373
      %645 = vmatprep.subr.mxu0 0.0
      %646 = vmatpush2.msra.mxu0 %v372
      %647 = vmatprep.mubr.f32.mxu0 %v237
      %648 = vmatmul.mubr.f32.gmra.mxu0 %v236
      %v649 = vpop.f32.mrf.mxu0
      %v650 = vadd.f32 %v535, %v649
      %v651 = vpop.f32.mrf.mxu0
      %652 = vmatprep.mubr.f32.mxu0 %v246
      %653 = vmatmul.mubr.f32.gmra.mxu0 %v245
      %v654 = vpop.f32.mrf.mxu0
      %v655 = vadd.f32 %v540, %v654
      %v656 = vpop.f32.mrf.mxu0
      %657 = vmatprep.mubr.f32.mxu0 %v255
      %658 = vmatmul.mubr.f32.gmra.mxu0 %v254
      %v659 = vpop.f32.mrf.mxu0
      %v660 = vadd.f32 %v545, %v659
      %v661 = vpop.f32.mrf.mxu0
      %662 = vmatprep.mubr.f32.mxu0 %v264
      %663 = vmatmul.mubr.f32.gmra.mxu0 %v263
      %v664 = vpop.f32.mrf.mxu0
      %v665 = vadd.f32 %v550, %v664
      %v666 = vpop.f32.mrf.mxu0
      %667 = vmatprep.mubr.f32.mxu0 %v273
      %668 = vmatmul.mubr.f32.gmra.mxu0 %v272
      %v669 = vpop.f32.mrf.mxu0
      %v670 = vadd.f32 %v555, %v669
      %v671 = vpop.f32.mrf.mxu0
      %672 = vmatprep.mubr.f32.mxu0 %v282
      %673 = vmatmul.mubr.f32.gmra.mxu0 %v281
      %v674 = vpop.f32.mrf.mxu0
      %v675 = vadd.f32 %v560, %v674
      %v676 = vpop.f32.mrf.mxu0
      %677 = vmatprep.mubr.f32.mxu0 %v291
      %678 = vmatmul.mubr.f32.gmra.mxu0 %v290
      %v679 = vpop.f32.mrf.mxu0
      %v680 = vadd.f32 %v565, %v679
      %v681 = vpop.f32.mrf.mxu0
      %682 = vmatprep.mubr.f32.mxu0 %v300
      %683 = vmatmul.mubr.f32.gmra.mxu0 %v299
      %v684 = vpop.f32.mrf.mxu0
      %v685 = vadd.f32 %v570, %v684
      %v686 = vpop.f32.mrf.mxu0
      %687 = vmatprep.mubr.f32.mxu0 %v309
      %688 = vmatmul.mubr.f32.gmra.mxu0 %v308
      %v689 = vpop.f32.mrf.mxu0
      %v690 = vadd.f32 %v575, %v689
      %v691 = vpop.f32.mrf.mxu0
      %692 = vmatprep.mubr.f32.mxu0 %v318
      %693 = vmatmul.mubr.f32.gmra.mxu0 %v317
      %v694 = vpop.f32.mrf.mxu0
      %v695 = vadd.f32 %v580, %v694
      %v696 = vpop.f32.mrf.mxu0
      %697 = vdwg.mxu0
      %698 = vmatprep.subr.mxu0 0.0
      %699 = vmatpush1.msra.mxu0 %v403
      %700 = vmatprep.subr.mxu0 0.0
      %701 = vmatpush1.msra.mxu0 %v402
      %702 = vmatprep.subr.mxu0 0.0
      %703 = vmatpush1.msra.mxu0 %v401
      %704 = vmatprep.subr.mxu0 0.0
      %705 = vmatpush1.msra.mxu0 %v400
      %706 = vmatprep.subr.mxu0 0.0
      %707 = vmatpush1.msra.mxu0 %v399
      %708 = vmatprep.subr.mxu0 0.0
      %709 = vmatpush1.msra.mxu0 %v398
      %710 = vmatprep.subr.mxu0 0.0
      %711 = vmatpush1.msra.mxu0 %v397
      %712 = vmatprep.subr.mxu0 0.0
      %713 = vmatpush1.msra.mxu0 %v396
      %714 = vmatprep.subr.mxu0 0.0
      %715 = vmatpush1.msra.mxu0 %v395
      %716 = vmatprep.subr.mxu0 0.0
      %717 = vmatpush1.msra.mxu0 %v394
      %718 = vmatprep.subr.mxu0 0.0
      %719 = vmatpush1.msra.mxu0 %v393
      %720 = vmatprep.subr.mxu0 0.0
      %721 = vmatpush1.msra.mxu0 %v392
      %722 = vmatprep.subr.mxu0 0.0
      %723 = vmatpush1.msra.mxu0 %v391
      %724 = vmatprep.subr.mxu0 0.0
      %725 = vmatpush1.msra.mxu0 %v390
      %726 = vmatprep.subr.mxu0 0.0
      %727 = vmatpush1.msra.mxu0 %v389
      %728 = vmatprep.subr.mxu0 0.0
      %729 = vmatpush1.msra.mxu0 %v388
      %730 = vmatprep.subr.mxu0 0.0
      %731 = vmatpush2.msra.mxu0 %v419
      %732 = vmatprep.subr.mxu0 0.0
      %733 = vmatpush2.msra.mxu0 %v418
      %734 = vmatprep.subr.mxu0 0.0
      %735 = vmatpush2.msra.mxu0 %v417
      %736 = vmatprep.subr.mxu0 0.0
      %737 = vmatpush2.msra.mxu0 %v416
      %738 = vmatprep.subr.mxu0 0.0
      %739 = vmatpush2.msra.mxu0 %v415
      %740 = vmatprep.subr.mxu0 0.0
      %741 = vmatpush2.msra.mxu0 %v414
      %742 = vmatprep.subr.mxu0 0.0
      %743 = vmatpush2.msra.mxu0 %v413
      %744 = vmatprep.subr.mxu0 0.0
      %745 = vmatpush2.msra.mxu0 %v412
      %746 = vmatprep.subr.mxu0 0.0
      %747 = vmatpush2.msra.mxu0 %v411
      %748 = vmatprep.subr.mxu0 0.0
      %749 = vmatpush2.msra.mxu0 %v410
      %750 = vmatprep.subr.mxu0 0.0
      %751 = vmatpush2.msra.mxu0 %v409
      %752 = vmatprep.subr.mxu0 0.0
      %753 = vmatpush2.msra.mxu0 %v408
      %754 = vmatprep.subr.mxu0 0.0
      %755 = vmatpush2.msra.mxu0 %v407
      %756 = vmatprep.subr.mxu0 0.0
      %757 = vmatpush2.msra.mxu0 %v406
      %758 = vmatprep.subr.mxu0 0.0
      %759 = vmatpush2.msra.mxu0 %v405
      %760 = vmatprep.subr.mxu0 0.0
      %761 = vmatpush2.msra.mxu0 %v404
      %762 = vmatprep.mubr.f32.mxu0 %v239
      %763 = vmatmul.mubr.f32.gmra.mxu0 %v238
      %v764 = vpop.f32.mrf.mxu0
      %v765 = vadd.f32 %v650, %v764
      %v766 = vpop.f32.mrf.mxu0
      %767 = vmatprep.mubr.f32.mxu0 %v248
      %768 = vmatmul.mubr.f32.gmra.mxu0 %v247
      %v769 = vpop.f32.mrf.mxu0
      %v770 = vadd.f32 %v655, %v769
      %v771 = vpop.f32.mrf.mxu0
      %772 = vmatprep.mubr.f32.mxu0 %v257
      %773 = vmatmul.mubr.f32.gmra.mxu0 %v256
      %v774 = vpop.f32.mrf.mxu0
      %v775 = vadd.f32 %v660, %v774
      %v776 = vpop.f32.mrf.mxu0
      %777 = vmatprep.mubr.f32.mxu0 %v266
      %778 = vmatmul.mubr.f32.gmra.mxu0 %v265
      %v779 = vpop.f32.mrf.mxu0
      %v780 = vadd.f32 %v665, %v779
      %v781 = vpop.f32.mrf.mxu0
      %782 = vmatprep.mubr.f32.mxu0 %v275
      %783 = vmatmul.mubr.f32.gmra.mxu0 %v274
      %v784 = vpop.f32.mrf.mxu0
      %v785 = vadd.f32 %v670, %v784
      %v786 = vpop.f32.mrf.mxu0
      %787 = vmatprep.mubr.f32.mxu0 %v284
      %788 = vmatmul.mubr.f32.gmra.mxu0 %v283
      %v789 = vpop.f32.mrf.mxu0
      %v790 = vadd.f32 %v675, %v789
      %v791 = vpop.f32.mrf.mxu0
      %792 = vmatprep.mubr.f32.mxu0 %v293
      %793 = vmatmul.mubr.f32.gmra.mxu0 %v292
      %v794 = vpop.f32.mrf.mxu0
      %v795 = vadd.f32 %v680, %v794
      %v796 = vpop.f32.mrf.mxu0
      %797 = vmatprep.mubr.f32.mxu0 %v302
      %798 = vmatmul.mubr.f32.gmra.mxu0 %v301
      %v799 = vpop.f32.mrf.mxu0
      %v800 = vadd.f32 %v685, %v799
      %v801 = vpop.f32.mrf.mxu0
      %802 = vmatprep.mubr.f32.mxu0 %v311
      %803 = vmatmul.mubr.f32.gmra.mxu0 %v310
      %v804 = vpop.f32.mrf.mxu0
      %v805 = vadd.f32 %v690, %v804
      %v806 = vpop.f32.mrf.mxu0
      %807 = vmatprep.mubr.f32.mxu0 %v320
      %808 = vmatmul.mubr.f32.gmra.mxu0 %v319
      %v809 = vpop.f32.mrf.mxu0
      %v810 = vadd.f32 %v695, %v809
      %v811 = vpop.f32.mrf.mxu0
      %812 = vdwg.mxu0
      %813 = vmatprep.subr.mxu0 0.0
      %814 = vmatpush1.msra.mxu0 %v435
      %815 = vmatprep.subr.mxu0 0.0
      %816 = vmatpush1.msra.mxu0 %v434
      %817 = vmatprep.subr.mxu0 0.0
      %818 = vmatpush1.msra.mxu0 %v433
      %819 = vmatprep.subr.mxu0 0.0
      %820 = vmatpush1.msra.mxu0 %v432
      %821 = vmatprep.subr.mxu0 0.0
      %822 = vmatpush1.msra.mxu0 %v431
      %823 = vmatprep.subr.mxu0 0.0
      %824 = vmatpush1.msra.mxu0 %v430
      %825 = vmatprep.subr.mxu0 0.0
      %826 = vmatpush1.msra.mxu0 %v429
      %827 = vmatprep.subr.mxu0 0.0
      %828 = vmatpush1.msra.mxu0 %v428
      %829 = vmatprep.subr.mxu0 0.0
      %830 = vmatpush1.msra.mxu0 %v427
      %831 = vmatprep.subr.mxu0 0.0
      %832 = vmatpush1.msra.mxu0 %v426
      %833 = vmatprep.subr.mxu0 0.0
      %834 = vmatpush1.msra.mxu0 %v425
      %835 = vmatprep.subr.mxu0 0.0
      %836 = vmatpush1.msra.mxu0 %v424
      %837 = vmatprep.subr.mxu0 0.0
      %838 = vmatpush1.msra.mxu0 %v423
      %839 = vmatprep.subr.mxu0 0.0
      %840 = vmatpush1.msra.mxu0 %v422
      %841 = vmatprep.subr.mxu0 0.0
      %842 = vmatpush1.msra.mxu0 %v421
      %843 = vmatprep.subr.mxu0 0.0
      %844 = vmatpush1.msra.mxu0 %v420
      %845 = vmatprep.subr.mxu0 0.0
      %846 = vmatpush2.msra.mxu0 %v451
      %847 = vmatprep.subr.mxu0 0.0
      %848 = vmatpush2.msra.mxu0 %v450
      %849 = vmatprep.subr.mxu0 0.0
      %850 = vmatpush2.msra.mxu0 %v449
      %851 = vmatprep.subr.mxu0 0.0
      %852 = vmatpush2.msra.mxu0 %v448
      %853 = vmatprep.subr.mxu0 0.0
      %854 = vmatpush2.msra.mxu0 %v447
      %855 = vmatprep.subr.mxu0 0.0
      %856 = vmatpush2.msra.mxu0 %v446
      %857 = vmatprep.subr.mxu0 0.0
      %858 = vmatpush2.msra.mxu0 %v445
      %859 = vmatprep.subr.mxu0 0.0
      %860 = vmatpush2.msra.mxu0 %v444
      %861 = vmatprep.subr.mxu0 0.0
      %862 = vmatpush2.msra.mxu0 %v443
      %863 = vmatprep.subr.mxu0 0.0
      %864 = vmatpush2.msra.mxu0 %v442
      %865 = vmatprep.subr.mxu0 0.0
      %866 = vmatpush2.msra.mxu0 %v441
      %867 = vmatprep.subr.mxu0 0.0
      %868 = vmatpush2.msra.mxu0 %v440
      %869 = vmatprep.subr.mxu0 0.0
      %870 = vmatpush2.msra.mxu0 %v439
      %871 = vmatprep.subr.mxu0 0.0
      %872 = vmatpush2.msra.mxu0 %v438
      %873 = vmatprep.subr.mxu0 0.0
      %874 = vmatpush2.msra.mxu0 %v437
      %875 = vmatprep.subr.mxu0 0.0
      %876 = vmatpush2.msra.mxu0 %v436
      %877 = vmatprep.mubr.f32.mxu0 %v241
      %878 = vmatmul.mubr.f32.gmra.mxu0 %v240
      %v879 = vpop.f32.mrf.mxu0
      %v880 = vadd.f32 %v765, %v879
      %v881 = vpop.f32.mrf.mxu0
      %882 = vmatprep.mubr.f32.mxu0 %v250
      %883 = vmatmul.mubr.f32.gmra.mxu0 %v249
      %v884 = vpop.f32.mrf.mxu0
      %v885 = vadd.f32 %v770, %v884
      %v886 = vpop.f32.mrf.mxu0
      %887 = vmatprep.mubr.f32.mxu0 %v259
      %888 = vmatmul.mubr.f32.gmra.mxu0 %v258
      %v889 = vpop.f32.mrf.mxu0
      %v890 = vadd.f32 %v775, %v889
      %v891 = vpop.f32.mrf.mxu0
      %892 = vmatprep.mubr.f32.mxu0 %v268
      %893 = vmatmul.mubr.f32.gmra.mxu0 %v267
      %v894 = vpop.f32.mrf.mxu0
      %v895 = vadd.f32 %v780, %v894
      %v896 = vpop.f32.mrf.mxu0
      %897 = vmatprep.mubr.f32.mxu0 %v277
      %898 = vmatmul.mubr.f32.gmra.mxu0 %v276
      %v899 = vpop.f32.mrf.mxu0
      %v900 = vadd.f32 %v785, %v899
      %v901 = vpop.f32.mrf.mxu0
      %902 = vmatprep.mubr.f32.mxu0 %v286
      %903 = vmatmul.mubr.f32.gmra.mxu0 %v285
      %v904 = vpop.f32.mrf.mxu0
      %v905 = vadd.f32 %v790, %v904
      %v906 = vpop.f32.mrf.mxu0
      %907 = vmatprep.mubr.f32.mxu0 %v295
      %908 = vmatmul.mubr.f32.gmra.mxu0 %v294
      %v909 = vpop.f32.mrf.mxu0
      %v910 = vadd.f32 %v795, %v909
      %v911 = vpop.f32.mrf.mxu0
      %912 = vmatprep.mubr.f32.mxu0 %v304
      %913 = vmatmul.mubr.f32.gmra.mxu0 %v303
      %v914 = vpop.f32.mrf.mxu0
      %v915 = vadd.f32 %v800, %v914
      %v916 = vpop.f32.mrf.mxu0
      %917 = vmatprep.mubr.f32.mxu0 %v313
      %918 = vmatmul.mubr.f32.gmra.mxu0 %v312
      %v919 = vpop.f32.mrf.mxu0
      %v920 = vadd.f32 %v805, %v919
      %v921 = vpop.f32.mrf.mxu0
      %922 = vmatprep.mubr.f32.mxu0 %v322
      %923 = vmatmul.mubr.f32.gmra.mxu0 %v321
      %v924 = vpop.f32.mrf.mxu0
      %v925 = vadd.f32 %v810, %v924
      %v926 = vpop.f32.mrf.mxu0
      %927 = vdwg.mxu0
      %928 = vmatprep.subr.mxu0 0.0
      %929 = vmatpush1.msra.mxu0 %v467
      %930 = vmatprep.subr.mxu0 0.0
      %931 = vmatpush1.msra.mxu0 %v466
      %932 = vmatprep.subr.mxu0 0.0
      %933 = vmatpush1.msra.mxu0 %v465
      %934 = vmatprep.subr.mxu0 0.0
      %935 = vmatpush1.msra.mxu0 %v464
      %936 = vmatprep.subr.mxu0 0.0
      %937 = vmatpush1.msra.mxu0 %v463
      %938 = vmatprep.subr.mxu0 0.0
      %939 = vmatpush1.msra.mxu0 %v462
      %940 = vmatprep.subr.mxu0 0.0
      %941 = vmatpush1.msra.mxu0 %v461
      %942 = vmatprep.subr.mxu0 0.0
      %943 = vmatpush1.msra.mxu0 %v460
      %944 = vmatprep.subr.mxu0 0.0
      %945 = vmatpush1.msra.mxu0 %v459
      %946 = vmatprep.subr.mxu0 0.0
      %947 = vmatpush1.msra.mxu0 %v458
      %948 = vmatprep.subr.mxu0 0.0
      %949 = vmatpush1.msra.mxu0 %v457
      %950 = vmatprep.subr.mxu0 0.0
      %951 = vmatpush1.msra.mxu0 %v456
      %952 = vmatprep.subr.mxu0 0.0
      %953 = vmatpush1.msra.mxu0 %v455
      %954 = vmatprep.subr.mxu0 0.0
      %955 = vmatpush1.msra.mxu0 %v454
      %956 = vmatprep.subr.mxu0 0.0
      %957 = vmatpush1.msra.mxu0 %v453
      %958 = vmatprep.subr.mxu0 0.0
      %959 = vmatpush1.msra.mxu0 %v452
      %960 = vmatprep.subr.mxu0 0.0
      %961 = vmatpush2.msra.mxu0 0.0
      %962 = vmatprep.subr.mxu0 0.0
      %963 = vmatpush2.msra.mxu0 0.0
      %964 = vmatprep.subr.mxu0 0.0
      %965 = vmatpush2.msra.mxu0 0.0
      %966 = vmatprep.subr.mxu0 0.0
      %967 = vmatpush2.msra.mxu0 0.0
      %968 = vmatprep.subr.mxu0 0.0
      %969 = vmatpush2.msra.mxu0 0.0
      %970 = vmatprep.subr.mxu0 0.0
      %971 = vmatpush2.msra.mxu0 0.0
      %972 = vmatprep.subr.mxu0 0.0
      %973 = vmatpush2.msra.mxu0 0.0
      %974 = vmatprep.subr.mxu0 0.0
      %975 = vmatpush2.msra.mxu0 0.0
      %976 = vmatprep.subr.mxu0 0.0
      %977 = vmatpush2.msra.mxu0 0.0
      %978 = vmatprep.subr.mxu0 0.0
      %979 = vmatpush2.msra.mxu0 0.0
      %980 = vmatprep.subr.mxu0 0.0
      %981 = vmatpush2.msra.mxu0 0.0
      %982 = vmatprep.subr.mxu0 0.0
      %983 = vmatpush2.msra.mxu0 0.0
      %984 = vmatprep.subr.mxu0 0.0
      %985 = vmatpush2.msra.mxu0 0.0
      %986 = vmatprep.subr.mxu0 0.0
      %987 = vmatpush2.msra.mxu0 0.0
      %988 = vmatprep.subr.mxu0 0.0
      %989 = vmatpush2.msra.mxu0 0.0
      %990 = vmatprep.subr.mxu0 0.0
      %991 = vmatpush2.msra.mxu0 0.0
      %992 = vmatprep.mubr.f32.mxu0 0.0
      %993 = vmatmul.mubr.f32.gmra.mxu0 %v242
      %v994 = vpop.f32.mrf.mxu0
      %v995 = vadd.f32 %v880, %v994
      %v996 = vpop.f32.mrf.mxu0
      %997 = vmatprep.mubr.f32.mxu0 0.0
      %998 = vmatmul.mubr.f32.gmra.mxu0 %v251
      %v999 = vpop.f32.mrf.mxu0
      %v1000 = vadd.f32 %v885, %v999
      %v1001 = vpop.f32.mrf.mxu0
      %1002 = vmatprep.mubr.f32.mxu0 0.0
      %1003 = vmatmul.mubr.f32.gmra.mxu0 %v260
      %v1004 = vpop.f32.mrf.mxu0
      %v1005 = vadd.f32 %v890, %v1004
      %v1006 = vpop.f32.mrf.mxu0
      %1007 = vmatprep.mubr.f32.mxu0 0.0
      %1008 = vmatmul.mubr.f32.gmra.mxu0 %v269
      %v1009 = vpop.f32.mrf.mxu0
      %v1010 = vadd.f32 %v895, %v1009
      %v1011 = vpop.f32.mrf.mxu0
      %1012 = vmatprep.mubr.f32.mxu0 0.0
      %1013 = vmatmul.mubr.f32.gmra.mxu0 %v278
      %v1014 = vpop.f32.mrf.mxu0
      %v1015 = vadd.f32 %v900, %v1014
      %v1016 = vpop.f32.mrf.mxu0
      %1017 = vmatprep.mubr.f32.mxu0 0.0
      %1018 = vmatmul.mubr.f32.gmra.mxu0 %v287
      %v1019 = vpop.f32.mrf.mxu0
      %v1020 = vadd.f32 %v905, %v1019
      %v1021 = vpop.f32.mrf.mxu0
      %1022 = vmatprep.mubr.f32.mxu0 0.0
      %1023 = vmatmul.mubr.f32.gmra.mxu0 %v296
      %v1024 = vpop.f32.mrf.mxu0
      %v1025 = vadd.f32 %v910, %v1024
      %v1026 = vpop.f32.mrf.mxu0
      %1027 = vmatprep.mubr.f32.mxu0 0.0
      %1028 = vmatmul.mubr.f32.gmra.mxu0 %v305
      %v1029 = vpop.f32.mrf.mxu0
      %v1030 = vadd.f32 %v915, %v1029
      %v1031 = vpop.f32.mrf.mxu0
      %1032 = vmatprep.mubr.f32.mxu0 0.0
      %1033 = vmatmul.mubr.f32.gmra.mxu0 %v314
      %v1034 = vpop.f32.mrf.mxu0
      %v1035 = vadd.f32 %v920, %v1034
      %v1036 = vpop.f32.mrf.mxu0
      %1037 = vmatprep.mubr.f32.mxu0 0.0
      %1038 = vmatmul.mubr.f32.gmra.mxu0 %v323
      %v1039 = vpop.f32.mrf.mxu0
      %v1040 = vadd.f32 %v925, %v1039
      %v1041 = vpop.f32.mrf.mxu0
      %1042 = vdwg.mxu0
      %v1043 = vmax.f32 %v995, 0.0
      %v1044 = vmax.f32 %v1000, 0.0
      %v1045 = vmax.f32 %v1005, 0.0
      %v1046 = vmax.f32 %v1010, 0.0
      %v1047 = vmax.f32 %v1015, 0.0
      %v1048 = vmax.f32 %v1020, 0.0
      %v1049 = vmax.f32 %v1025, 0.0
      %v1050 = vmax.f32 %v1030, 0.0
      %v1051 = vmax.f32 %v1035, 0.0
      %v1052 = vmax.f32 %v1040, 0.0
      %1053 = vst [vmem:[#allocation2] sm:$0xff] %v1043
      %1054 = vst [vmem:[#allocation2 + $0x28] sm:$0xff] %v1044
      %1055 = vst [vmem:[#allocation2 + $0x8] sm:$0xff] %v1045
      %1056 = vst [vmem:[#allocation2 + $0x30] sm:$0xff] %v1046
      %1057 = vst [vmem:[#allocation2 + $0x10] sm:$0xff] %v1047
      %1058 = vst [vmem:[#allocation2 + $0x38] sm:$0xff] %v1048
      %1059 = vst [vmem:[#allocation2 + $0x18] sm:$0xff] %v1049
      %1060 = vst [vmem:[#allocation2 + $0x40] sm:$0xff] %v1050
      %1061 = vst [vmem:[#allocation2 + $0x20] sm:$0xff] %v1051
      %1062 = vst [vmem:[#allocation2 + $0x48] sm:$0xff] %v1052
      %v1063 = vld [vmem:[#allocation2] sm:$0xff]
      %v1064 = vld [vmem:[#allocation2 + $0x8] sm:$0xff]
      %v1065 = vld [vmem:[#allocation2 + $0x10] sm:$0xff]
      %v1066 = vld [vmem:[#allocation2 + $0x18] sm:$0xff]
      %v1067 = vld [vmem:[#allocation2 + $0x20] sm:$0xff]
      %v1068 = vld [vmem:[#allocation2 + $0x28] sm:$0xff]
      %v1069 = vld [vmem:[#allocation2 + $0x30] sm:$0xff]
      %v1070 = vld [vmem:[#allocation2 + $0x38] sm:$0xff]
      %v1071 = vld [vmem:[#allocation2 + $0x40] sm:$0xff]
      %v1072 = vld [vmem:[#allocation2 + $0x48] sm:$0xff]
      %v1073 = vld [vmem:[%s2] sm:$0xff]
      %v1074 = vld [vmem:[%s2 + $0x8] sm:$0xff]
      %v1075 = vld [vmem:[%s2 + $0x10] sm:$0xff]
      %v1076 = vld [vmem:[%s2 + $0x18] sm:$0xff]
      %v1077 = vld [vmem:[%s2 + $0x20] sm:$0xff]
      %v1078 = vld [vmem:[%s2 + $0x28] sm:$0xff]
      %v1079 = vld [vmem:[%s2 + $0x30] sm:$0xff]
      %v1080 = vld [vmem:[%s2 + $0x38] sm:$0xff]
      %v1081 = vld [vmem:[%s2 + $0x40] sm:$0xff]
      %v1082 = vld [vmem:[%s2 + $0x48] sm:$0xff]
      %v1083 = vld [vmem:[%s2 + $0x50] sm:$0xff]
      %v1084 = vld [vmem:[%s2 + $0x58] sm:$0xff]
      %v1085 = vld [vmem:[%s2 + $0x60] sm:$0xff]
      %v1086 = vld [vmem:[%s2 + $0x68] sm:$0xff]
      %v1087 = vld [vmem:[%s2 + $0x70] sm:$0xff]
      %v1088 = vld [vmem:[%s2 + $0x78] sm:$0xff]
      %v1089 = vld [vmem:[%s2 + $0x80] sm:$0xff]
      %v1090 = vld [vmem:[%s2 + $0x88] sm:$0xff]
      %v1091 = vld [vmem:[%s2 + $0x90] sm:$0xff]
      %v1092 = vld [vmem:[%s2 + $0x98] sm:$0xff]
      %v1093 = vld [vmem:[%s2 + $0xa0] sm:$0xff]
      %v1094 = vld [vmem:[%s2 + $0xa8] sm:$0xff]
      %v1095 = vld [vmem:[%s2 + $0xb0] sm:$0xff]
      %v1096 = vld [vmem:[%s2 + $0xb8] sm:$0xff]
      %v1097 = vld [vmem:[%s2 + $0xc0] sm:$0xff]
      %v1098 = vld [vmem:[%s2 + $0xc8] sm:$0xff]
      %v1099 = vld [vmem:[%s2 + $0xd0] sm:$0xff]
      %v1100 = vld [vmem:[%s2 + $0xd8] sm:$0xff]
      %v1101 = vld [vmem:[%s2 + $0xe0] sm:$0xff]
      %v1102 = vld [vmem:[%s2 + $0xe8] sm:$0xff]
      %v1103 = vld [vmem:[%s2 + $0xf0] sm:$0xff]
      %v1104 = vld [vmem:[%s2 + $0xf8] sm:$0xff]
      %v1105 = vld [vmem:[%s2 + $0x100] sm:$0xff]
      %v1106 = vld [vmem:[%s2 + $0x108] sm:$0xff]
      %v1107 = vld [vmem:[%s2 + $0x110] sm:$0xff]
      %v1108 = vld [vmem:[%s2 + $0x118] sm:$0xff]
      %v1109 = vld [vmem:[%s2 + $0x120] sm:$0xff]
      %v1110 = vld [vmem:[%s2 + $0x128] sm:$0xff]
      %v1111 = vld [vmem:[%s2 + $0x130] sm:$0xff]
      %v1112 = vld [vmem:[%s2 + $0x138] sm:$0xff]
      %v1113 = vld [vmem:[%s2 + $0x140] sm:$0xff]
      %v1114 = vld [vmem:[%s2 + $0x148] sm:$0xff]
      %v1115 = vld [vmem:[%s2 + $0x150] sm:$0xff]
      %v1116 = vld [vmem:[%s2 + $0x158] sm:$0xff]
      %v1117 = vld [vmem:[%s2 + $0x160] sm:$0xff]
      %v1118 = vld [vmem:[%s2 + $0x168] sm:$0xff]
      %v1119 = vld [vmem:[%s2 + $0x170] sm:$0xff]
      %v1120 = vld [vmem:[%s2 + $0x178] sm:$0xff]
      %v1121 = vld [vmem:[%s2 + $0x180] sm:$0xff]
      %v1122 = vld [vmem:[%s2 + $0x188] sm:$0xff]
      %v1123 = vld [vmem:[%s2 + $0x190] sm:$0xff]
      %v1124 = vld [vmem:[%s2 + $0x198] sm:$0xff]
      %v1125 = vld [vmem:[%s2 + $0x1a0] sm:$0xff]
      %v1126 = vld [vmem:[%s2 + $0x1a8] sm:$0xff]
      %v1127 = vld [vmem:[%s2 + $0x1b0] sm:$0xff]
      %v1128 = vld [vmem:[%s2 + $0x1b8] sm:$0xff]
      %v1129 = vld [vmem:[%s2 + $0x1c0] sm:$0xff]
      %v1130 = vld [vmem:[%s2 + $0x1c8] sm:$0xff]
      %v1131 = vld [vmem:[%s2 + $0x1d0] sm:$0xff]
      %v1132 = vld [vmem:[%s2 + $0x1d8] sm:$0xff]
      %v1133 = vld [vmem:[%s2 + $0x1e0] sm:$0xff]
      %v1134 = vld [vmem:[%s2 + $0x1e8] sm:$0xff]
      %v1135 = vld [vmem:[%s2 + $0x1f0] sm:$0xff]
      %v1136 = vld [vmem:[%s2 + $0x1f8] sm:$0xff]
      %v1137 = vld [vmem:[%s2 + $0x200] sm:$0xff]
      %v1138 = vld [vmem:[%s2 + $0x208] sm:$0xff]
      %v1139 = vld [vmem:[%s2 + $0x210] sm:$0xff]
      %v1140 = vld [vmem:[%s2 + $0x218] sm:$0xff]
      %v1141 = vld [vmem:[%s2 + $0x220] sm:$0xff]
      %v1142 = vld [vmem:[%s2 + $0x228] sm:$0xff]
      %v1143 = vld [vmem:[%s2 + $0x230] sm:$0xff]
      %v1144 = vld [vmem:[%s2 + $0x238] sm:$0xff]
      %v1145 = vld [vmem:[%s2 + $0x240] sm:$0xff]
      %v1146 = vld [vmem:[%s2 + $0x248] sm:$0xff]
      %v1147 = vld [vmem:[%s2 + $0x250] sm:$0xff]
      %v1148 = vld [vmem:[%s2 + $0x258] sm:$0xff]
      %v1149 = vld [vmem:[%s2 + $0x260] sm:$0xff]
      %v1150 = vld [vmem:[%s2 + $0x268] sm:$0xff]
      %v1151 = vld [vmem:[%s2 + $0x270] sm:$0xff]
      %v1152 = vld [vmem:[%s2 + $0x278] sm:$0xff]
      %v1153 = vld [vmem:[%s3] sm:$0x1]
      %v1155 = vlaneseq
      %v1156 = vshrl.u32 %v1155, 7
      %v1157 = vsub.s32 0, %v1156
      %v1158 = vrot.slane %v1153, %v1157
      %1160 = vmatprep.subr.mxu0 0.0
      %1161 = vmatpush1.msra.mxu0 %v1088
      %1162 = vmatprep.subr.mxu0 0.0
      %1163 = vmatpush1.msra.mxu0 %v1087
      %1164 = vmatprep.subr.mxu0 0.0
      %1165 = vmatpush1.msra.mxu0 %v1086
      %1166 = vmatprep.subr.mxu0 0.0
      %1167 = vmatpush1.msra.mxu0 %v1085
      %1168 = vmatprep.subr.mxu0 0.0
      %1169 = vmatpush1.msra.mxu0 %v1084
      %1170 = vmatprep.subr.mxu0 0.0
      %1171 = vmatpush1.msra.mxu0 %v1083
      %1172 = vmatprep.subr.mxu0 0.0
      %1173 = vmatpush1.msra.mxu0 %v1082
      %1174 = vmatprep.subr.mxu0 0.0
      %1175 = vmatpush1.msra.mxu0 %v1081
      %1176 = vmatprep.subr.mxu0 0.0
      %1177 = vmatpush1.msra.mxu0 %v1080
      %1178 = vmatprep.subr.mxu0 0.0
      %1179 = vmatpush1.msra.mxu0 %v1079
      %1180 = vmatprep.subr.mxu0 0.0
      %1181 = vmatpush1.msra.mxu0 %v1078
      %1182 = vmatprep.subr.mxu0 0.0
      %1183 = vmatpush1.msra.mxu0 %v1077
      %1184 = vmatprep.subr.mxu0 0.0
      %1185 = vmatpush1.msra.mxu0 %v1076
      %1186 = vmatprep.subr.mxu0 0.0
      %1187 = vmatpush1.msra.mxu0 %v1075
      %1188 = vmatprep.subr.mxu0 0.0
      %1189 = vmatpush1.msra.mxu0 %v1074
      %1190 = vmatprep.subr.mxu0 0.0
      %1191 = vmatpush1.msra.mxu0 %v1073
      %1192 = vmatprep.subr.mxu0 0.0
      %1193 = vmatpush2.msra.mxu0 %v1104
      %1194 = vmatprep.subr.mxu0 0.0
      %1195 = vmatpush2.msra.mxu0 %v1103
      %1196 = vmatprep.subr.mxu0 0.0
      %1197 = vmatpush2.msra.mxu0 %v1102
      %1198 = vmatprep.subr.mxu0 0.0
      %1199 = vmatpush2.msra.mxu0 %v1101
      %1200 = vmatprep.subr.mxu0 0.0
      %1201 = vmatpush2.msra.mxu0 %v1100
      %1202 = vmatprep.subr.mxu0 0.0
      %1203 = vmatpush2.msra.mxu0 %v1099
      %1204 = vmatprep.subr.mxu0 0.0
      %1205 = vmatpush2.msra.mxu0 %v1098
      %1206 = vmatprep.subr.mxu0 0.0
      %1207 = vmatpush2.msra.mxu0 %v1097
      %1208 = vmatprep.subr.mxu0 0.0
      %1209 = vmatpush2.msra.mxu0 %v1096
      %1210 = vmatprep.subr.mxu0 0.0
      %1211 = vmatpush2.msra.mxu0 %v1095
      %1212 = vmatprep.subr.mxu0 0.0
      %1213 = vmatpush2.msra.mxu0 %v1094
      %1214 = vmatprep.subr.mxu0 0.0
      %1215 = vmatpush2.msra.mxu0 %v1093
      %1216 = vmatprep.subr.mxu0 0.0
      %1217 = vmatpush2.msra.mxu0 %v1092
      %1218 = vmatprep.subr.mxu0 0.0
      %1219 = vmatpush2.msra.mxu0 %v1091
      %1220 = vmatprep.subr.mxu0 0.0
      %1221 = vmatpush2.msra.mxu0 %v1090
      %1222 = vmatprep.subr.mxu0 0.0
      %1223 = vmatpush2.msra.mxu0 %v1089
      %1224 = vmatprep.mubr.f32.mxu0 %v1064
      %1225 = vmatmul.mubr.f32.gmra.mxu0 %v1063
      %v1226 = vpop.f32.mrf.mxu0
      %v1227 = vadd.f32 %v1158, %v1226
      %v1228 = vpop.f32.mrf.mxu0
      %1229 = vmatprep.mubr.f32.mxu0 %v1069
      %1230 = vmatmul.mubr.f32.gmra.mxu0 %v1068
      %v1231 = vpop.f32.mrf.mxu0
      %v1232 = vadd.f32 %v1158, %v1231
      %v1233 = vpop.f32.mrf.mxu0
      %1234 = vdwg.mxu0
      %1235 = vmatprep.subr.mxu0 0.0
      %1236 = vmatpush1.msra.mxu0 %v1120
      %1237 = vmatprep.subr.mxu0 0.0
      %1238 = vmatpush1.msra.mxu0 %v1119
      %1239 = vmatprep.subr.mxu0 0.0
      %1240 = vmatpush1.msra.mxu0 %v1118
      %1241 = vmatprep.subr.mxu0 0.0
      %1242 = vmatpush1.msra.mxu0 %v1117
      %1243 = vmatprep.subr.mxu0 0.0
      %1244 = vmatpush1.msra.mxu0 %v1116
      %1245 = vmatprep.subr.mxu0 0.0
      %1246 = vmatpush1.msra.mxu0 %v1115
      %1247 = vmatprep.subr.mxu0 0.0
      %1248 = vmatpush1.msra.mxu0 %v1114
      %1249 = vmatprep.subr.mxu0 0.0
      %1250 = vmatpush1.msra.mxu0 %v1113
      %1251 = vmatprep.subr.mxu0 0.0
      %1252 = vmatpush1.msra.mxu0 %v1112
      %1253 = vmatprep.subr.mxu0 0.0
      %1254 = vmatpush1.msra.mxu0 %v1111
      %1255 = vmatprep.subr.mxu0 0.0
      %1256 = vmatpush1.msra.mxu0 %v1110
      %1257 = vmatprep.subr.mxu0 0.0
      %1258 = vmatpush1.msra.mxu0 %v1109
      %1259 = vmatprep.subr.mxu0 0.0
      %1260 = vmatpush1.msra.mxu0 %v1108
      %1261 = vmatprep.subr.mxu0 0.0
      %1262 = vmatpush1.msra.mxu0 %v1107
      %1263 = vmatprep.subr.mxu0 0.0
      %1264 = vmatpush1.msra.mxu0 %v1106
      %1265 = vmatprep.subr.mxu0 0.0
      %1266 = vmatpush1.msra.mxu0 %v1105
      %1267 = vmatprep.subr.mxu0 0.0
      %1268 = vmatpush2.msra.mxu0 %v1136
      %1269 = vmatprep.subr.mxu0 0.0
      %1270 = vmatpush2.msra.mxu0 %v1135
      %1271 = vmatprep.subr.mxu0 0.0
      %1272 = vmatpush2.msra.mxu0 %v1134
      %1273 = vmatprep.subr.mxu0 0.0
      %1274 = vmatpush2.msra.mxu0 %v1133
      %1275 = vmatprep.subr.mxu0 0.0
      %1276 = vmatpush2.msra.mxu0 %v1132
      %1277 = vmatprep.subr.mxu0 0.0
      %1278 = vmatpush2.msra.mxu0 %v1131
      %1279 = vmatprep.subr.mxu0 0.0
      %1280 = vmatpush2.msra.mxu0 %v1130
      %1281 = vmatprep.subr.mxu0 0.0
      %1282 = vmatpush2.msra.mxu0 %v1129
      %1283 = vmatprep.subr.mxu0 0.0
      %1284 = vmatpush2.msra.mxu0 %v1128
      %1285 = vmatprep.subr.mxu0 0.0
      %1286 = vmatpush2.msra.mxu0 %v1127
      %1287 = vmatprep.subr.mxu0 0.0
      %1288 = vmatpush2.msra.mxu0 %v1126
      %1289 = vmatprep.subr.mxu0 0.0
      %1290 = vmatpush2.msra.mxu0 %v1125
      %1291 = vmatprep.subr.mxu0 0.0
      %1292 = vmatpush2.msra.mxu0 %v1124
      %1293 = vmatprep.subr.mxu0 0.0
      %1294 = vmatpush2.msra.mxu0 %v1123
      %1295 = vmatprep.subr.mxu0 0.0
      %1296 = vmatpush2.msra.mxu0 %v1122
      %1297 = vmatprep.subr.mxu0 0.0
      %1298 = vmatpush2.msra.mxu0 %v1121
      %1299 = vmatprep.mubr.f32.mxu0 %v1066
      %1300 = vmatmul.mubr.f32.gmra.mxu0 %v1065
      %v1301 = vpop.f32.mrf.mxu0
      %v1302 = vadd.f32 %v1227, %v1301
      %v1303 = vpop.f32.mrf.mxu0
      %1304 = vmatprep.mubr.f32.mxu0 %v1071
      %1305 = vmatmul.mubr.f32.gmra.mxu0 %v1070
      %v1306 = vpop.f32.mrf.mxu0
      %v1307 = vadd.f32 %v1232, %v1306
      %v1308 = vpop.f32.mrf.mxu0
      %1309 = vdwg.mxu0
      %1310 = vmatprep.subr.mxu0 0.0
      %1311 = vmatpush1.msra.mxu0 %v1152
      %1312 = vmatprep.subr.mxu0 0.0
      %1313 = vmatpush1.msra.mxu0 %v1151
      %1314 = vmatprep.subr.mxu0 0.0
      %1315 = vmatpush1.msra.mxu0 %v1150
      %1316 = vmatprep.subr.mxu0 0.0
      %1317 = vmatpush1.msra.mxu0 %v1149
      %1318 = vmatprep.subr.mxu0 0.0
      %1319 = vmatpush1.msra.mxu0 %v1148
      %1320 = vmatprep.subr.mxu0 0.0
      %1321 = vmatpush1.msra.mxu0 %v1147
      %1322 = vmatprep.subr.mxu0 0.0
      %1323 = vmatpush1.msra.mxu0 %v1146
      %1324 = vmatprep.subr.mxu0 0.0
      %1325 = vmatpush1.msra.mxu0 %v1145
      %1326 = vmatprep.subr.mxu0 0.0
      %1327 = vmatpush1.msra.mxu0 %v1144
      %1328 = vmatprep.subr.mxu0 0.0
      %1329 = vmatpush1.msra.mxu0 %v1143
      %1330 = vmatprep.subr.mxu0 0.0
      %1331 = vmatpush1.msra.mxu0 %v1142
      %1332 = vmatprep.subr.mxu0 0.0
      %1333 = vmatpush1.msra.mxu0 %v1141
      %1334 = vmatprep.subr.mxu0 0.0
      %1335 = vmatpush1.msra.mxu0 %v1140
      %1336 = vmatprep.subr.mxu0 0.0
      %1337 = vmatpush1.msra.mxu0 %v1139
      %1338 = vmatprep.subr.mxu0 0.0
      %1339 = vmatpush1.msra.mxu0 %v1138
      %1340 = vmatprep.subr.mxu0 0.0
      %1341 = vmatpush1.msra.mxu0 %v1137
      %1342 = vmatprep.subr.mxu0 0.0
      %1343 = vmatpush2.msra.mxu0 0.0
      %1344 = vmatprep.subr.mxu0 0.0
      %1345 = vmatpush2.msra.mxu0 0.0
      %1346 = vmatprep.subr.mxu0 0.0
      %1347 = vmatpush2.msra.mxu0 0.0
      %1348 = vmatprep.subr.mxu0 0.0
      %1349 = vmatpush2.msra.mxu0 0.0
      %1350 = vmatprep.subr.mxu0 0.0
      %1351 = vmatpush2.msra.mxu0 0.0
      %1352 = vmatprep.subr.mxu0 0.0
      %1353 = vmatpush2.msra.mxu0 0.0
      %1354 = vmatprep.subr.mxu0 0.0
      %1355 = vmatpush2.msra.mxu0 0.0
      %1356 = vmatprep.subr.mxu0 0.0
      %1357 = vmatpush2.msra.mxu0 0.0
      %1358 = vmatprep.subr.mxu0 0.0
      %1359 = vmatpush2.msra.mxu0 0.0
      %1360 = vmatprep.subr.mxu0 0.0
      %1361 = vmatpush2.msra.mxu0 0.0
      %1362 = vmatprep.subr.mxu0 0.0
      %1363 = vmatpush2.msra.mxu0 0.0
      %1364 = vmatprep.subr.mxu0 0.0
      %1365 = vmatpush2.msra.mxu0 0.0
      %1366 = vmatprep.subr.mxu0 0.0
      %1367 = vmatpush2.msra.mxu0 0.0
      %1368 = vmatprep.subr.mxu0 0.0
      %1369 = vmatpush2.msra.mxu0 0.0
      %1370 = vmatprep.subr.mxu0 0.0
      %1371 = vmatpush2.msra.mxu0 0.0
      %1372 = vmatprep.subr.mxu0 0.0
      %1373 = vmatpush2.msra.mxu0 0.0
      %1374 = vmatprep.mubr.f32.mxu0 0.0
      %1375 = vmatmul.mubr.f32.gmra.mxu0 %v1067
      %v1376 = vpop.f32.mrf.mxu0
      %v1377 = vadd.f32 %v1302, %v1376
      %v1378 = vpop.f32.mrf.mxu0
      %1379 = vmatprep.mubr.f32.mxu0 0.0
      %1380 = vmatmul.mubr.f32.gmra.mxu0 %v1072
      %v1381 = vpop.f32.mrf.mxu0
      %v1382 = vadd.f32 %v1307, %v1381
      %v1383 = vpop.f32.mrf.mxu0
      %1384 = vdwg.mxu0
      %v1385 = vmax.f32 %v1377, 0.0
      %v1386 = vmax.f32 %v1382, 0.0
      %vm1387 = vcmask 195584
      %1388 = vst.msk [vmem:[%s233] sm:$0xff] %vm1387, %v1385
      %1389 = vst.msk [vmem:[%s233 + $0x8] sm:$0xff] %vm1387, %v1386
      %p1390 = scmp.lt.s32.totalorder %s19, 1
      %s1391 = scalar_select %p1390, %s19, 1
      %p1392 = scmp.lt.s32.totalorder %s20, 0
      %s1393 = scalar_select %p1392, %s20, 0
      %s1394 = smul.addr %s1393, 2
      %s1395 = smul.addr %s1391, 2
      %s1396 = sadd.s32 %s1394, %s1395
      %s1397 = smul.addr %s1396, 8
      %s1398 = scalar_lea.vmem %s4, %s1397
      // Predicated region
      $region37: #{model_forward.1} parent=35 // pred_check
        %p1399 = pneg %p138
      $region38: #{model_forward.1} parent=35 // pred_check_branch
        %1401 = sbr.rel (%p1399) target = $region40
      $region39: #{model_forward.1} parent=35 // pred_region
        _
      $region40: #{model_forward.1} parent=35 // pred_fallthru
        _
    $region36: #{model_forward.1} parent=5 // pred_fallthru
      _
    %p1402 = scmp.le.s32.totalorder 2, %s10
    // Predicated region
    $region41: #{model_forward.1} parent=5 // pred_check
      %p1403 = pneg %p1402
    $region42: #{model_forward.1} parent=5 // pred_check_branch
      %1405 = sbr.rel (%p1403) target = $region44
    $region43: #{model_forward.1} parent=5 // pred_region
      %s1406 = ssub.s32 %s10, 2
      // Predicated region
      $region45: #{model_forward.1} parent=43 // pred_check
        %p1407 = pneg %p144
      $region46: #{model_forward.1} parent=43 // pred_check_branch
        %1409 = sbr.rel (%p1407) target = $region48
      $region47: #{model_forward.1} parent=43 // pred_region
        %p1410 = scmp.lt.s32.totalorder %s21, 1
        %s1411 = scalar_select %p1410, %s21, 1
        %p1412 = scmp.lt.s32.totalorder %s22, 0
        %s1413 = scalar_select %p1412, %s22, 0
        %s1414 = smul.addr %s1413, 2
        %s1415 = smul.addr %s1411, 2
        %s1416 = sadd.s32 %s1414, %s1415
        %s1417 = smul.addr %s1416, 8
        %s1418 = scalar_lea.vmem %s4, %s1417
      $region48: #{model_forward.1} parent=43 // pred_fallthru
        _
    $region44: #{model_forward.1} parent=5 // pred_fallthru
      _
  $region6: #{model_forward.1} parent=0 // loop_footer
    %s14 = sadd.s32 1, %s10
  $region7: #{model_forward.1} parent=0 // loop_footer_branch
    %9 = sbr.rel target = $region3
  $region8: #{model_forward.1} parent=0 // loop_exit
    _

</llo_original>
